<compile_context>
chip_gen: v7x
topology: tpu7x:2x2x1
jax: 0.10.0
libtpu: 0.0.40
codegen_flags: <defaults>
</compile_context>

<pallas_src>
import math

import jax
import jax.numpy as jnp
from jax.experimental import pallas as pl
from jax.experimental.pallas import tpu as pltpu

LANE = 128


def _round_up(n, m):
    return ((n + m - 1) // m) * m


def _lcm(a, b):
    return a * b // math.gcd(a, b)


def img_encoder_forward(x, params, *, patch=4):
    """ImgEncoder forward. x: [B, C, H, W] float32 (NCHW). Returns [B, img_dim] f32."""
    B, C, H, W = x.shape
    assert H % patch == 0 and W % patch == 0, "image must be divisible by patch"
    num_patches = (H // patch) * (W // patch)

    wp, bp = params["w_patch"], params["b_patch"]     # [C*p*p, F], [1, F]
    wfc, bfc = params["w_fc"], params["b_fc"]         # [F, D],    [1, D]
    F = wp.shape[1]
    D = wfc.shape[1]
    Fp = _round_up(F, LANE)                            # lane-dense resident weights
    Dp = _round_up(D, LANE)                            # lane-dense (unmasked) output

    # --- fold patch structure / mean pool / biases into the (tiny) weights ---
    #   mean_n(x_n@Wp + bp) @ Wfc + bfc == (sum_n x_n)@Wp @ (Wfc/NP) + (bp@Wfc + bfc)
    #   (sum_n x_n)@Wp == sum_{c,h,w} x[b,c,h,w] * Wp[(c, h%p, w%p), :]
    G = _lcm(patch, 8)                                 # 8-aligned H group size
    # TODO(synk): H not divisible by lcm(patch, 8) would need zero-padding of the
    # raw input; standard configs (224 with patch 4/8/14/16/32) all divide.
    assert H % G == 0, f"H={H} must be divisible by lcm(patch, 8)={G}"

    wp_r = wp.reshape(C, patch, patch, F)
    we = wp_r[:, jnp.arange(G) % patch, :, :]          # [C, G, patch, F]
    we = we[:, :, jnp.arange(W) % patch, :]            # [C, G, W, F]
    we = jnp.pad(we, ((0, 0), (0, 0), (0, 0), (0, Fp - F))).astype(jnp.float32)
    wfc_e = jnp.pad(wfc / num_patches, ((0, Fp - F), (0, Dp - D))).astype(jnp.float32)
    bias_e = jnp.pad(bp @ wfc + bfc, ((0, 0), (0, Dp - D))).astype(jnp.float32)

    # --- generation-aware sizing ---
    try:
        vmem_cap = int(pltpu.get_tpu_info().vmem_capacity_bytes)
    except Exception:
        vmem_cap = 64 * 1024 * 1024                    # conservative (v7x-sized)
    target_block_bytes = (8 << 20) if vmem_cap >= (96 << 20) else (4 << 20)

    # batch tile: >=2 blocks for large 8-aligned batches (v7x megacore).
    if B % 8 == 0 and B > 8:
        TB = min(64, max(8, (B // 2) // 8 * 8))
        while B % TB:
            TB -= 8
    else:
        # TODO(synk): large batches not divisible by 8 should be padded to a
        # multiple of 8 by the caller; small batches use one full-extent block.
        TB = B

    # H tile: k groups of G rows, sized toward target_block_bytes but keeping at
    # least 2 reduction steps when possible (pipelining / accumulator path).
    n_groups = H // G
    bytes_per_group = TB * C * G * W * x.dtype.itemsize
    k_max = max(1, min(n_groups, target_block_bytes // max(1, bytes_per_group)))
    if n_groups >= 2:
        k_max = min(k_max, n_groups // 2)
    k = next(c for c in range(k_max, 0, -1) if n_groups % c == 0)
    TH = k * G
    grid = (B // TB, n_groups // k)

    def kernel(x_ref, we_ref, wfc_ref, b_ref, o_ref, acc_ref):
        h = pl.program_id(1)

        @pl.when(h == 0)
        def _init():
            acc_ref[...] = jnp.zeros_like(acc_ref)

        # Fold this block's k G-row groups into the accumulator: 8-aligned static
        # sublane slices + whole-vreg VALU adds, hidden under the input DMA.
        s = x_ref[:, :, 0:G, :]
        for r in range(1, k):
            s = s + x_ref[:, :, r * G:(r + 1) * G, :]
        acc_ref[...] += s

        @pl.when(h == pl.num_programs(1) - 1)
        def _finalize():
            feats = jnp.zeros((TB, Fp), jnp.float32)
            for c in range(C):                         # tiny, once per batch block
                for t in range(G):
                    feats = feats + jnp.dot(acc_ref[:, c, t, :],
                                            we_ref[c, t, :, :],
                                            preferred_element_type=jnp.float32)
            out = jnp.dot(feats, wfc_ref[...], preferred_element_type=jnp.float32)
            o_ref[...] = (out + b_ref[...]).astype(o_ref.dtype)

    # --- VMEM budget: actual usage + ~50% headroom, capped under the part's VMEM ---
    in_block = TB * C * TH * W * x.dtype.itemsize
    out_block = TB * Dp * 4
    resident = (we.size + wfc_e.size + bias_e.size) * 4
    acc_bytes = TB * C * G * W * 4
    need = 2 * in_block + 2 * out_block + resident + acc_bytes
    vmem_limit = int(min(max(int(need * 1.5), 4 << 20), vmem_cap - (16 << 20)))

    out_padded = pl.pallas_call(
        kernel,
        out_shape=jax.ShapeDtypeStruct((B, Dp), jnp.float32),
        grid_spec=pltpu.PrefetchScalarGridSpec(
            num_scalar_prefetch=0,
            grid=grid,
            in_specs=[
                # raw NCHW image, streamed (double-buffered) along batch / H
                pl.BlockSpec((TB, C, TH, W), lambda b, h: (b, 0, h, 0)),
                # tiny weights, resident in VMEM for the whole grid
                pl.BlockSpec((C, G, W, Fp), lambda b, h: (0, 0, 0, 0)),
                pl.BlockSpec((Fp, Dp), lambda b, h: (0, 0)),
                pl.BlockSpec((1, Dp), lambda b, h: (0, 0)),
            ],
            out_specs=pl.BlockSpec((TB, Dp), lambda b, h: (b, 0)),
            scratch_shapes=[pltpu.VMEM((TB, C, G, W), jnp.float32)],
        ),
        compiler_params=pltpu.CompilerParams(
            dimension_semantics=("parallel", "arbitrary"),
            vmem_limit_bytes=vmem_limit,
        ),
    )(x, we, wfc_e, bias_e)

    return out_padded[:, :D]


def make_params(key, *, in_chans=3, patch=4, num_features=32, img_dim=16):
    """Deterministic synthetic weights (shapes match the module's __init__)."""
    patch_dim = in_chans * patch * patch
    k1, k2, k3, k4 = jax.random.split(key, 4)
    return {
        # backbone stand-in (linear patch embedding)
        "w_patch": jax.random.normal(k1, (patch_dim, num_features),
                                     jnp.float32) / jnp.sqrt(patch_dim),
        "b_patch": jax.random.normal(k2, (1, num_features), jnp.float32) * 0.01,
        # self.fc = nn.Linear(num_features, img_dim)
        "w_fc": jax.random.normal(k3, (num_features, img_dim),
                                  jnp.float32) / jnp.sqrt(num_features),
        "b_fc": jax.random.normal(k4, (1, img_dim), jnp.float32) * 0.01,
    }


def reference_forward(x, params, *, patch=4):
    """Pure-JAX f32 reference of the same computation (for sanity check)."""
    B, C, H, W = x.shape
    ph, pw = H // patch, W // patch
    p = x.reshape(B, C, ph, patch, pw, patch).transpose(0, 2, 4, 1, 3, 5)
    p = p.reshape(B, ph * pw, C * patch * patch)
    h = p @ params["w_patch"] + params["b_patch"]
    feats = h.mean(axis=1)
    return feats @ params["w_fc"] + params["b_fc"]


if __name__ == "__main__":
    key = jax.random.PRNGKey(0)
    kx, kp = jax.random.split(key)

    B, C, H, W = 2, 3, 16, 16          # small stand-in for [batch, 3, 224, 224]
    num_features, img_dim, patch = 32, 16, 4

    x = jax.random.normal(kx, (B, C, H, W), jnp.float32)
    params = make_params(kp, in_chans=C, patch=patch,
                         num_features=num_features, img_dim=img_dim)

    out = jax.block_until_ready(img_encoder_forward(x, params, patch=patch))
    ref = reference_forward(x, params, patch=patch)

    assert out.shape == (B, img_dim)
    # whole pipeline is f32 (streamed pixels, accumulator, matmuls) -> tight match
    err = float(jnp.max(jnp.abs(out - ref)))
    assert jnp.allclose(out, ref, atol=1e-3, rtol=1e-3), err

    print("KERNEL_OK")
</pallas_src>

<mosaic_0001>
module attributes {stable_mosaic.version = 11 : i64} {
  func.func @kernel(%arg0: i32, %arg1: i32, %arg2: memref<2x3x8x16xf32, #tpu.memory_space<vmem>>, %arg3: memref<3x8x16x128xf32, #tpu.memory_space<vmem>>, %arg4: memref<128x128xf32, #tpu.memory_space<vmem>>, %arg5: memref<1x128xf32, #tpu.memory_space<vmem>>, %arg6: memref<2x128xf32, #tpu.memory_space<vmem>>, %arg7: memref<2x3x8x16xf32, #tpu.memory_space<vmem>>) attributes {dimension_semantics = [#tpu.dimension_semantics<parallel>, #tpu.dimension_semantics<arbitrary>], iteration_bounds = array<i64: 1, 2>, scalar_prefetch = 0 : i64, scratch_operands = 1 : i64, tpu.core_type = #tpu.core_type<tc>, window_params = [{transform_indices = @transform_0, window_bounds = array<i64: 2, 3, 8, 16>}, {pipeline_mode = #tpu.pipeline_mode<synchronous>, transform_indices = @transform_1, window_bounds = array<i64: 3, 8, 16, 128>}, {pipeline_mode = #tpu.pipeline_mode<synchronous>, transform_indices = @transform_2, window_bounds = array<i64: 128, 128>}, {pipeline_mode = #tpu.pipeline_mode<synchronous>, transform_indices = @transform_3, window_bounds = array<i64: 1, 128>}, {transform_indices = @transform_4, window_bounds = array<i64: 2, 128>}]} {
    %c0_i32 = arith.constant 0 : i32
    %0 = arith.cmpi eq, %arg1, %c0_i32 : i32
    %1 = arith.extui %0 : i1 to i32
    %c0_i32_0 = arith.constant 0 : i32
    %2 = arith.cmpi ne, %1, %c0_i32_0 : i32
    scf.if %2 {
      %cst = arith.constant 0.000000e+00 : f32
      %10 = vector.broadcast %cst : f32 to vector<2x3x8x16xf32>
      %c0_13 = arith.constant 0 : index
      %c0_14 = arith.constant 0 : index
      %c0_15 = arith.constant 0 : index
      %c0_16 = arith.constant 0 : index
      %11 = vector.load %arg7[%c0_13, %c0_14, %c0_15, %c0_16] : memref<2x3x8x16xf32, #tpu.memory_space<vmem>>, vector<2x3x8x16xf32>
      tpu.vector_store %arg7[%c0_13, %c0_14, %c0_15, %c0_16], %10 {strides = array<i32>} : memref<2x3x8x16xf32, #tpu.memory_space<vmem>>, vector<2x3x8x16xf32>,
    } else {
    }
    %c0 = arith.constant 0 : index
    %c0_1 = arith.constant 0 : index
    %c0_2 = arith.constant 0 : index
    %c0_3 = arith.constant 0 : index
    %3 = vector.load %arg2[%c0, %c0_1, %c0_2, %c0_3] : memref<2x3x8x16xf32, #tpu.memory_space<vmem>>, vector<2x3x8x16xf32>
    %c0_4 = arith.constant 0 : index
    %c0_5 = arith.constant 0 : index
    %c0_6 = arith.constant 0 : index
    %c0_7 = arith.constant 0 : index
    %4 = vector.load %arg7[%c0_4, %c0_5, %c0_6, %c0_7] : memref<2x3x8x16xf32, #tpu.memory_space<vmem>>, vector<2x3x8x16xf32>
    %5 = arith.addf %4, %3 : vector<2x3x8x16xf32>
    %c0_8 = arith.constant 0 : index
    %c0_9 = arith.constant 0 : index
    %c0_10 = arith.constant 0 : index
    %c0_11 = arith.constant 0 : index
    %6 = vector.load %arg7[%c0_8, %c0_9, %c0_10, %c0_11] : memref<2x3x8x16xf32, #tpu.memory_space<vmem>>, vector<2x3x8x16xf32>
    tpu.vector_store %arg7[%c0_8, %c0_9, %c0_10, %c0_11], %5 {strides = array<i32>} : memref<2x3x8x16xf32, #tpu.memory_space<vmem>>, vector<2x3x8x16xf32>,
    %c1_i32 = arith.constant 1 : i32
    %7 = arith.cmpi eq, %arg1, %c1_i32 : i32
    %8 = arith.extui %7 : i1 to i32
    %c0_i32_12 = arith.constant 0 : i32
    %9 = arith.cmpi ne, %8, %c0_i32_12 : i32
    scf.if %9 {
      %cst = arith.constant 0.000000e+00 : f32
      %10 = vector.broadcast %cst : f32 to vector<2x128xf32>
      %c0_13 = arith.constant 0 : index
      %c0_14 = arith.constant 0 : index
      %c0_15 = arith.constant 0 : index
      %c0_16 = arith.constant 0 : index
      %11 = vector.load %arg7[%c0_13, %c0_14, %c0_15, %c0_16] : memref<2x3x8x16xf32, #tpu.memory_space<vmem>>, vector<2x1x1x16xf32>
      %12 = vector.shape_cast %11 : vector<2x1x1x16xf32> to vector<2x16xf32>
      %c0_17 = arith.constant 0 : index
      %c0_18 = arith.constant 0 : index
      %c0_19 = arith.constant 0 : index
      %c0_20 = arith.constant 0 : index
      %13 = vector.load %arg3[%c0_17, %c0_18, %c0_19, %c0_20] : memref<3x8x16x128xf32, #tpu.memory_space<vmem>>, vector<1x1x16x128xf32>
      %14 = vector.shape_cast %13 : vector<1x1x16x128xf32> to vector<16x128xf32>
      %cst_21 = arith.constant dense<0.000000e+00> : vector<2x128xf32>
      %15 = tpu.matmul %12, %14, %cst_21 {dimension_numbers = #tpu.dot_dimension_numbers<[1], [0], [0], [1], [0, 0, 1, 1], [], []>} : vector<2x16xf32>, vector<16x128xf32>, vector<2x128xf32> -> vector<2x128xf32>
      %16 = arith.addf %10, %15 : vector<2x128xf32>
      %c0_22 = arith.constant 0 : index
      %c0_23 = arith.constant 0 : index
      %c1 = arith.constant 1 : index
      %c0_24 = arith.constant 0 : index
      %17 = vector.load %arg7[%c0_22, %c0_23, %c1, %c0_24] : memref<2x3x8x16xf32, #tpu.memory_space<vmem>>, vector<2x1x1x16xf32>
      %18 = vector.shape_cast %17 : vector<2x1x1x16xf32> to vector<2x16xf32>
      %c0_25 = arith.constant 0 : index
      %c1_26 = arith.constant 1 : index
      %c0_27 = arith.constant 0 : index
      %c0_28 = arith.constant 0 : index
      %19 = vector.load %arg3[%c0_25, %c1_26, %c0_27, %c0_28] : memref<3x8x16x128xf32, #tpu.memory_space<vmem>>, vector<1x1x16x128xf32>
      %20 = vector.shape_cast %19 : vector<1x1x16x128xf32> to vector<16x128xf32>
      %cst_29 = arith.constant dense<0.000000e+00> : vector<2x128xf32>
      %21 = tpu.matmul %18, %20, %cst_29 {dimension_numbers = #tpu.dot_dimension_numbers<[1], [0], [0], [1], [0, 0, 1, 1], [], []>} : vector<2x16xf32>, vector<16x128xf32>, vector<2x128xf32> -> vector<2x128xf32>
      %22 = arith.addf %16, %21 : vector<2x128xf32>
      %c0_30 = arith.constant 0 : index
      %c0_31 = arith.constant 0 : index
      %c2 = arith.constant 2 : index
      %c0_32 = arith.constant 0 : index
      %23 = vector.load %arg7[%c0_30, %c0_31, %c2, %c0_32] : memref<2x3x8x16xf32, #tpu.memory_space<vmem>>, vector<2x1x1x16xf32>
      %24 = vector.shape_cast %23 : vector<2x1x1x16xf32> to vector<2x16xf32>
      %c0_33 = arith.constant 0 : index
      %c2_34 = arith.constant 2 : index
      %c0_35 = arith.constant 0 : index
      %c0_36 = arith.constant 0 : index
      %25 = vector.load %arg3[%c0_33, %c2_34, %c0_35, %c0_36] : memref<3x8x16x128xf32, #tpu.memory_space<vmem>>, vector<1x1x16x128xf32>
      %26 = vector.shape_cast %25 : vector<1x1x16x128xf32> to vector<16x128xf32>
      %cst_37 = arith.constant dense<0.000000e+00> : vector<2x128xf32>
      %27 = tpu.matmul %24, %26, %cst_37 {dimension_numbers = #tpu.dot_dimension_numbers<[1], [0], [0], [1], [0, 0, 1, 1], [], []>} : vector<2x16xf32>, vector<16x128xf32>, vector<2x128xf32> -> vector<2x128xf32>
      %28 = arith.addf %22, %27 : vector<2x128xf32>
      %c0_38 = arith.constant 0 : index
      %c0_39 = arith.constant 0 : index
      %c3 = arith.constant 3 : index
      %c0_40 = arith.constant 0 : index
      %29 = vector.load %arg7[%c0_38, %c0_39, %c3, %c0_40] : memref<2x3x8x16xf32, #tpu.memory_space<vmem>>, vector<2x1x1x16xf32>
      %30 = vector.shape_cast %29 : vector<2x1x1x16xf32> to vector<2x16xf32>
      %c0_41 = arith.constant 0 : index
      %c3_42 = arith.constant 3 : index
      %c0_43 = arith.constant 0 : index
      %c0_44 = arith.constant 0 : index
      %31 = vector.load %arg3[%c0_41, %c3_42, %c0_43, %c0_44] : memref<3x8x16x128xf32, #tpu.memory_space<vmem>>, vector<1x1x16x128xf32>
      %32 = vector.shape_cast %31 : vector<1x1x16x128xf32> to vector<16x128xf32>
      %cst_45 = arith.constant dense<0.000000e+00> : vector<2x128xf32>
      %33 = tpu.matmul %30, %32, %cst_45 {dimension_numbers = #tpu.dot_dimension_numbers<[1], [0], [0], [1], [0, 0, 1, 1], [], []>} : vector<2x16xf32>, vector<16x128xf32>, vector<2x128xf32> -> vector<2x128xf32>
      %34 = arith.addf %28, %33 : vector<2x128xf32>
      %c0_46 = arith.constant 0 : index
      %c0_47 = arith.constant 0 : index
      %c4 = arith.constant 4 : index
      %c0_48 = arith.constant 0 : index
      %35 = vector.load %arg7[%c0_46, %c0_47, %c4, %c0_48] : memref<2x3x8x16xf32, #tpu.memory_space<vmem>>, vector<2x1x1x16xf32>
      %36 = vector.shape_cast %35 : vector<2x1x1x16xf32> to vector<2x16xf32>
      %c0_49 = arith.constant 0 : index
      %c4_50 = arith.constant 4 : index
      %c0_51 = arith.constant 0 : index
      %c0_52 = arith.constant 0 : index
      %37 = vector.load %arg3[%c0_49, %c4_50, %c0_51, %c0_52] : memref<3x8x16x128xf32, #tpu.memory_space<vmem>>, vector<1x1x16x128xf32>
      %38 = vector.shape_cast %37 : vector<1x1x16x128xf32> to vector<16x128xf32>
      %cst_53 = arith.constant dense<0.000000e+00> : vector<2x128xf32>
      %39 = tpu.matmul %36, %38, %cst_53 {dimension_numbers = #tpu.dot_dimension_numbers<[1], [0], [0], [1], [0, 0, 1, 1], [], []>} : vector<2x16xf32>, vector<16x128xf32>, vector<2x128xf32> -> vector<2x128xf32>
      %40 = arith.addf %34, %39 : vector<2x128xf32>
      %c0_54 = arith.constant 0 : index
      %c0_55 = arith.constant 0 : index
      %c5 = arith.constant 5 : index
      %c0_56 = arith.constant 0 : index
      %41 = vector.load %arg7[%c0_54, %c0_55, %c5, %c0_56] : memref<2x3x8x16xf32, #tpu.memory_space<vmem>>, vector<2x1x1x16xf32>
      %42 = vector.shape_cast %41 : vector<2x1x1x16xf32> to vector<2x16xf32>
      %c0_57 = arith.constant 0 : index
      %c5_58 = arith.constant 5 : index
      %c0_59 = arith.constant 0 : index
      %c0_60 = arith.constant 0 : index
      %43 = vector.load %arg3[%c0_57, %c5_58, %c0_59, %c0_60] : memref<3x8x16x128xf32, #tpu.memory_space<vmem>>, vector<1x1x16x128xf32>
      %44 = vector.shape_cast %43 : vector<1x1x16x128xf32> to vector<16x128xf32>
      %cst_61 = arith.constant dense<0.000000e+00> : vector<2x128xf32>
      %45 = tpu.matmul %42, %44, %cst_61 {dimension_numbers = #tpu.dot_dimension_numbers<[1], [0], [0], [1], [0, 0, 1, 1], [], []>} : vector<2x16xf32>, vector<16x128xf32>, vector<2x128xf32> -> vector<2x128xf32>
      %46 = arith.addf %40, %45 : vector<2x128xf32>
      %c0_62 = arith.constant 0 : index
      %c0_63 = arith.constant 0 : index
      %c6 = arith.constant 6 : index
      %c0_64 = arith.constant 0 : index
      %47 = vector.load %arg7[%c0_62, %c0_63, %c6, %c0_64] : memref<2x3x8x16xf32, #tpu.memory_space<vmem>>, vector<2x1x1x16xf32>
      %48 = vector.shape_cast %47 : vector<2x1x1x16xf32> to vector<2x16xf32>
      %c0_65 = arith.constant 0 : index
      %c6_66 = arith.constant 6 : index
      %c0_67 = arith.constant 0 : index
      %c0_68 = arith.constant 0 : index
      %49 = vector.load %arg3[%c0_65, %c6_66, %c0_67, %c0_68] : memref<3x8x16x128xf32, #tpu.memory_space<vmem>>, vector<1x1x16x128xf32>
      %50 = vector.shape_cast %49 : vector<1x1x16x128xf32> to vector<16x128xf32>
      %cst_69 = arith.constant dense<0.000000e+00> : vector<2x128xf32>
      %51 = tpu.matmul %48, %50, %cst_69 {dimension_numbers = #tpu.dot_dimension_numbers<[1], [0], [0], [1], [0, 0, 1, 1], [], []>} : vector<2x16xf32>, vector<16x128xf32>, vector<2x128xf32> -> vector<2x128xf32>
      %52 = arith.addf %46, %51 : vector<2x128xf32>
      %c0_70 = arith.constant 0 : index
      %c0_71 = arith.constant 0 : index
      %c7 = arith.constant 7 : index
      %c0_72 = arith.constant 0 : index
      %53 = vector.load %arg7[%c0_70, %c0_71, %c7, %c0_72] : memref<2x3x8x16xf32, #tpu.memory_space<vmem>>, vector<2x1x1x16xf32>
      %54 = vector.shape_cast %53 : vector<2x1x1x16xf32> to vector<2x16xf32>
      %c0_73 = arith.constant 0 : index
      %c7_74 = arith.constant 7 : index
      %c0_75 = arith.constant 0 : index
      %c0_76 = arith.constant 0 : index
      %55 = vector.load %arg3[%c0_73, %c7_74, %c0_75, %c0_76] : memref<3x8x16x128xf32, #tpu.memory_space<vmem>>, vector<1x1x16x128xf32>
      %56 = vector.shape_cast %55 : vector<1x1x16x128xf32> to vector<16x128xf32>
      %cst_77 = arith.constant dense<0.000000e+00> : vector<2x128xf32>
      %57 = tpu.matmul %54, %56, %cst_77 {dimension_numbers = #tpu.dot_dimension_numbers<[1], [0], [0], [1], [0, 0, 1, 1], [], []>} : vector<2x16xf32>, vector<16x128xf32>, vector<2x128xf32> -> vector<2x128xf32>
      %58 = arith.addf %52, %57 : vector<2x128xf32>
      %c0_78 = arith.constant 0 : index
      %c1_79 = arith.constant 1 : index
      %c0_80 = arith.constant 0 : index
      %c0_81 = arith.constant 0 : index
      %59 = vector.load %arg7[%c0_78, %c1_79, %c0_80, %c0_81] : memref<2x3x8x16xf32, #tpu.memory_space<vmem>>, vector<2x1x1x16xf32>
      %60 = vector.shape_cast %59 : vector<2x1x1x16xf32> to vector<2x16xf32>
      %c1_82 = arith.constant 1 : index
      %c0_83 = arith.constant 0 : index
      %c0_84 = arith.constant 0 : index
      %c0_85 = arith.constant 0 : index
      %61 = vector.load %arg3[%c1_82, %c0_83, %c0_84, %c0_85] : memref<3x8x16x128xf32, #tpu.memory_space<vmem>>, vector<1x1x16x128xf32>
      %62 = vector.shape_cast %61 : vector<1x1x16x128xf32> to vector<16x128xf32>
      %cst_86 = arith.constant dense<0.000000e+00> : vector<2x128xf32>
      %63 = tpu.matmul %60, %62, %cst_86 {dimension_numbers = #tpu.dot_dimension_numbers<[1], [0], [0], [1], [0, 0, 1, 1], [], []>} : vector<2x16xf32>, vector<16x128xf32>, vector<2x128xf32> -> vector<2x128xf32>
      %64 = arith.addf %58, %63 : vector<2x128xf32>
      %c0_87 = arith.constant 0 : index
      %c1_88 = arith.constant 1 : index
      %c1_89 = arith.constant 1 : index
      %c0_90 = arith.constant 0 : index
      %65 = vector.load %arg7[%c0_87, %c1_88, %c1_89, %c0_90] : memref<2x3x8x16xf32, #tpu.memory_space<vmem>>, vector<2x1x1x16xf32>
      %66 = vector.shape_cast %65 : vector<2x1x1x16xf32> to vector<2x16xf32>
      %c1_91 = arith.constant 1 : index
      %c1_92 = arith.constant 1 : index
      %c0_93 = arith.constant 0 : index
      %c0_94 = arith.constant 0 : index
      %67 = vector.load %arg3[%c1_91, %c1_92, %c0_93, %c0_94] : memref<3x8x16x128xf32, #tpu.memory_space<vmem>>, vector<1x1x16x128xf32>
      %68 = vector.shape_cast %67 : vector<1x1x16x128xf32> to vector<16x128xf32>
      %cst_95 = arith.constant dense<0.000000e+00> : vector<2x128xf32>
      %69 = tpu.matmul %66, %68, %cst_95 {dimension_numbers = #tpu.dot_dimension_numbers<[1], [0], [0], [1], [0, 0, 1, 1], [], []>} : vector<2x16xf32>, vector<16x128xf32>, vector<2x128xf32> -> vector<2x128xf32>
      %70 = arith.addf %64, %69 : vector<2x128xf32>
      %c0_96 = arith.constant 0 : index
      %c1_97 = arith.constant 1 : index
      %c2_98 = arith.constant 2 : index
      %c0_99 = arith.constant 0 : index
      %71 = vector.load %arg7[%c0_96, %c1_97, %c2_98, %c0_99] : memref<2x3x8x16xf32, #tpu.memory_space<vmem>>, vector<2x1x1x16xf32>
      %72 = vector.shape_cast %71 : vector<2x1x1x16xf32> to vector<2x16xf32>
      %c1_100 = arith.constant 1 : index
      %c2_101 = arith.constant 2 : index
      %c0_102 = arith.constant 0 : index
      %c0_103 = arith.constant 0 : index
      %73 = vector.load %arg3[%c1_100, %c2_101, %c0_102, %c0_103] : memref<3x8x16x128xf32, #tpu.memory_space<vmem>>, vector<1x1x16x128xf32>
      %74 = vector.shape_cast %73 : vector<1x1x16x128xf32> to vector<16x128xf32>
      %cst_104 = arith.constant dense<0.000000e+00> : vector<2x128xf32>
      %75 = tpu.matmul %72, %74, %cst_104 {dimension_numbers = #tpu.dot_dimension_numbers<[1], [0], [0], [1], [0, 0, 1, 1], [], []>} : vector<2x16xf32>, vector<16x128xf32>, vector<2x128xf32> -> vector<2x128xf32>
      %76 = arith.addf %70, %75 : vector<2x128xf32>
      %c0_105 = arith.constant 0 : index
      %c1_106 = arith.constant 1 : index
      %c3_107 = arith.constant 3 : index
      %c0_108 = arith.constant 0 : index
      %77 = vector.load %arg7[%c0_105, %c1_106, %c3_107, %c0_108] : memref<2x3x8x16xf32, #tpu.memory_space<vmem>>, vector<2x1x1x16xf32>
      %78 = vector.shape_cast %77 : vector<2x1x1x16xf32> to vector<2x16xf32>
      %c1_109 = arith.constant 1 : index
      %c3_110 = arith.constant 3 : index
      %c0_111 = arith.constant 0 : index
      %c0_112 = arith.constant 0 : index
      %79 = vector.load %arg3[%c1_109, %c3_110, %c0_111, %c0_112] : memref<3x8x16x128xf32, #tpu.memory_space<vmem>>, vector<1x1x16x128xf32>
      %80 = vector.shape_cast %79 : vector<1x1x16x128xf32> to vector<16x128xf32>
      %cst_113 = arith.constant dense<0.000000e+00> : vector<2x128xf32>
      %81 = tpu.matmul %78, %80, %cst_113 {dimension_numbers = #tpu.dot_dimension_numbers<[1], [0], [0], [1], [0, 0, 1, 1], [], []>} : vector<2x16xf32>, vector<16x128xf32>, vector<2x128xf32> -> vector<2x128xf32>
      %82 = arith.addf %76, %81 : vector<2x128xf32>
      %c0_114 = arith.constant 0 : index
      %c1_115 = arith.constant 1 : index
      %c4_116 = arith.constant 4 : index
      %c0_117 = arith.constant 0 : index
      %83 = vector.load %arg7[%c0_114, %c1_115, %c4_116, %c0_117] : memref<2x3x8x16xf32, #tpu.memory_space<vmem>>, vector<2x1x1x16xf32>
      %84 = vector.shape_cast %83 : vector<2x1x1x16xf32> to vector<2x16xf32>
      %c1_118 = arith.constant 1 : index
      %c4_119 = arith.constant 4 : index
      %c0_120 = arith.constant 0 : index
      %c0_121 = arith.constant 0 : index
      %85 = vector.load %arg3[%c1_118, %c4_119, %c0_120, %c0_121] : memref<3x8x16x128xf32, #tpu.memory_space<vmem>>, vector<1x1x16x128xf32>
      %86 = vector.shape_cast %85 : vector<1x1x16x128xf32> to vector<16x128xf32>
      %cst_122 = arith.constant dense<0.000000e+00> : vector<2x128xf32>
      %87 = tpu.matmul %84, %86, %cst_122 {dimension_numbers = #tpu.dot_dimension_numbers<[1], [0], [0], [1], [0, 0, 1, 1], [], []>} : vector<2x16xf32>, vector<16x128xf32>, vector<2x128xf32> -> vector<2x128xf32>
      %88 = arith.addf %82, %87 : vector<2x128xf32>
      %c0_123 = arith.constant 0 : index
      %c1_124 = arith.constant 1 : index
      %c5_125 = arith.constant 5 : index
      %c0_126 = arith.constant 0 : index
      %89 = vector.load %arg7[%c0_123, %c1_124, %c5_125, %c0_126] : memref<2x3x8x16xf32, #tpu.memory_space<vmem>>, vector<2x1x1x16xf32>
      %90 = vector.shape_cast %89 : vector<2x1x1x16xf32> to vector<2x16xf32>
      %c1_127 = arith.constant 1 : index
      %c5_128 = arith.constant 5 : index
      %c0_129 = arith.constant 0 : index
      %c0_130 = arith.constant 0 : index
      %91 = vector.load %arg3[%c1_127, %c5_128, %c0_129, %c0_130] : memref<3x8x16x128xf32, #tpu.memory_space<vmem>>, vector<1x1x16x128xf32>
      %92 = vector.shape_cast %91 : vector<1x1x16x128xf32> to vector<16x128xf32>
      %cst_131 = arith.constant dense<0.000000e+00> : vector<2x128xf32>
      %93 = tpu.matmul %90, %92, %cst_131 {dimension_numbers = #tpu.dot_dimension_numbers<[1], [0], [0], [1], [0, 0, 1, 1], [], []>} : vector<2x16xf32>, vector<16x128xf32>, vector<2x128xf32> -> vector<2x128xf32>
      %94 = arith.addf %88, %93 : vector<2x128xf32>
      %c0_132 = arith.constant 0 : index
      %c1_133 = arith.constant 1 : index
      %c6_134 = arith.constant 6 : index
      %c0_135 = arith.constant 0 : index
      %95 = vector.load %arg7[%c0_132, %c1_133, %c6_134, %c0_135] : memref<2x3x8x16xf32, #tpu.memory_space<vmem>>, vector<2x1x1x16xf32>
      %96 = vector.shape_cast %95 : vector<2x1x1x16xf32> to vector<2x16xf32>
      %c1_136 = arith.constant 1 : index
      %c6_137 = arith.constant 6 : index
      %c0_138 = arith.constant 0 : index
      %c0_139 = arith.constant 0 : index
      %97 = vector.load %arg3[%c1_136, %c6_137, %c0_138, %c0_139] : memref<3x8x16x128xf32, #tpu.memory_space<vmem>>, vector<1x1x16x128xf32>
      %98 = vector.shape_cast %97 : vector<1x1x16x128xf32> to vector<16x128xf32>
      %cst_140 = arith.constant dense<0.000000e+00> : vector<2x128xf32>
      %99 = tpu.matmul %96, %98, %cst_140 {dimension_numbers = #tpu.dot_dimension_numbers<[1], [0], [0], [1], [0, 0, 1, 1], [], []>} : vector<2x16xf32>, vector<16x128xf32>, vector<2x128xf32> -> vector<2x128xf32>
      %100 = arith.addf %94, %99 : vector<2x128xf32>
      %c0_141 = arith.constant 0 : index
      %c1_142 = arith.constant 1 : index
      %c7_143 = arith.constant 7 : index
      %c0_144 = arith.constant 0 : index
      %101 = vector.load %arg7[%c0_141, %c1_142, %c7_143, %c0_144] : memref<2x3x8x16xf32, #tpu.memory_space<vmem>>, vector<2x1x1x16xf32>
      %102 = vector.shape_cast %101 : vector<2x1x1x16xf32> to vector<2x16xf32>
      %c1_145 = arith.constant 1 : index
      %c7_146 = arith.constant 7 : index
      %c0_147 = arith.constant 0 : index
      %c0_148 = arith.constant 0 : index
      %103 = vector.load %arg3[%c1_145, %c7_146, %c0_147, %c0_148] : memref<3x8x16x128xf32, #tpu.memory_space<vmem>>, vector<1x1x16x128xf32>
      %104 = vector.shape_cast %103 : vector<1x1x16x128xf32> to vector<16x128xf32>
      %cst_149 = arith.constant dense<0.000000e+00> : vector<2x128xf32>
      %105 = tpu.matmul %102, %104, %cst_149 {dimension_numbers = #tpu.dot_dimension_numbers<[1], [0], [0], [1], [0, 0, 1, 1], [], []>} : vector<2x16xf32>, vector<16x128xf32>, vector<2x128xf32> -> vector<2x128xf32>
      %106 = arith.addf %100, %105 : vector<2x128xf32>
      %c0_150 = arith.constant 0 : index
      %c2_151 = arith.constant 2 : index
      %c0_152 = arith.constant 0 : index
      %c0_153 = arith.constant 0 : index
      %107 = vector.load %arg7[%c0_150, %c2_151, %c0_152, %c0_153] : memref<2x3x8x16xf32, #tpu.memory_space<vmem>>, vector<2x1x1x16xf32>
      %108 = vector.shape_cast %107 : vector<2x1x1x16xf32> to vector<2x16xf32>
      %c2_154 = arith.constant 2 : index
      %c0_155 = arith.constant 0 : index
      %c0_156 = arith.constant 0 : index
      %c0_157 = arith.constant 0 : index
      %109 = vector.load %arg3[%c2_154, %c0_155, %c0_156, %c0_157] : memref<3x8x16x128xf32, #tpu.memory_space<vmem>>, vector<1x1x16x128xf32>
      %110 = vector.shape_cast %109 : vector<1x1x16x128xf32> to vector<16x128xf32>
      %cst_158 = arith.constant dense<0.000000e+00> : vector<2x128xf32>
      %111 = tpu.matmul %108, %110, %cst_158 {dimension_numbers = #tpu.dot_dimension_numbers<[1], [0], [0], [1], [0, 0, 1, 1], [], []>} : vector<2x16xf32>, vector<16x128xf32>, vector<2x128xf32> -> vector<2x128xf32>
      %112 = arith.addf %106, %111 : vector<2x128xf32>
      %c0_159 = arith.constant 0 : index
      %c2_160 = arith.constant 2 : index
      %c1_161 = arith.constant 1 : index
      %c0_162 = arith.constant 0 : index
      %113 = vector.load %arg7[%c0_159, %c2_160, %c1_161, %c0_162] : memref<2x3x8x16xf32, #tpu.memory_space<vmem>>, vector<2x1x1x16xf32>
      %114 = vector.shape_cast %113 : vector<2x1x1x16xf32> to vector<2x16xf32>
      %c2_163 = arith.constant 2 : index
      %c1_164 = arith.constant 1 : index
      %c0_165 = arith.constant 0 : index
      %c0_166 = arith.constant 0 : index
      %115 = vector.load %arg3[%c2_163, %c1_164, %c0_165, %c0_166] : memref<3x8x16x128xf32, #tpu.memory_space<vmem>>, vector<1x1x16x128xf32>
      %116 = vector.shape_cast %115 : vector<1x1x16x128xf32> to vector<16x128xf32>
      %cst_167 = arith.constant dense<0.000000e+00> : vector<2x128xf32>
      %117 = tpu.matmul %114, %116, %cst_167 {dimension_numbers = #tpu.dot_dimension_numbers<[1], [0], [0], [1], [0, 0, 1, 1], [], []>} : vector<2x16xf32>, vector<16x128xf32>, vector<2x128xf32> -> vector<2x128xf32>
      %118 = arith.addf %112, %117 : vector<2x128xf32>
      %c0_168 = arith.constant 0 : index
      %c2_169 = arith.constant 2 : index
      %c2_170 = arith.constant 2 : index
      %c0_171 = arith.constant 0 : index
      %119 = vector.load %arg7[%c0_168, %c2_169, %c2_170, %c0_171] : memref<2x3x8x16xf32, #tpu.memory_space<vmem>>, vector<2x1x1x16xf32>
      %120 = vector.shape_cast %119 : vector<2x1x1x16xf32> to vector<2x16xf32>
      %c2_172 = arith.constant 2 : index
      %c2_173 = arith.constant 2 : index
      %c0_174 = arith.constant 0 : index
      %c0_175 = arith.constant 0 : index
      %121 = vector.load %arg3[%c2_172, %c2_173, %c0_174, %c0_175] : memref<3x8x16x128xf32, #tpu.memory_space<vmem>>, vector<1x1x16x128xf32>
      %122 = vector.shape_cast %121 : vector<1x1x16x128xf32> to vector<16x128xf32>
      %cst_176 = arith.constant dense<0.000000e+00> : vector<2x128xf32>
      %123 = tpu.matmul %120, %122, %cst_176 {dimension_numbers = #tpu.dot_dimension_numbers<[1], [0], [0], [1], [0, 0, 1, 1], [], []>} : vector<2x16xf32>, vector<16x128xf32>, vector<2x128xf32> -> vector<2x128xf32>
      %124 = arith.addf %118, %123 : vector<2x128xf32>
      %c0_177 = arith.constant 0 : index
      %c2_178 = arith.constant 2 : index
      %c3_179 = arith.constant 3 : index
      %c0_180 = arith.constant 0 : index
      %125 = vector.load %arg7[%c0_177, %c2_178, %c3_179, %c0_180] : memref<2x3x8x16xf32, #tpu.memory_space<vmem>>, vector<2x1x1x16xf32>
      %126 = vector.shape_cast %125 : vector<2x1x1x16xf32> to vector<2x16xf32>
      %c2_181 = arith.constant 2 : index
      %c3_182 = arith.constant 3 : index
      %c0_183 = arith.constant 0 : index
      %c0_184 = arith.constant 0 : index
      %127 = vector.load %arg3[%c2_181, %c3_182, %c0_183, %c0_184] : memref<3x8x16x128xf32, #tpu.memory_space<vmem>>, vector<1x1x16x128xf32>
      %128 = vector.shape_cast %127 : vector<1x1x16x128xf32> to vector<16x128xf32>
      %cst_185 = arith.constant dense<0.000000e+00> : vector<2x128xf32>
      %129 = tpu.matmul %126, %128, %cst_185 {dimension_numbers = #tpu.dot_dimension_numbers<[1], [0], [0], [1], [0, 0, 1, 1], [], []>} : vector<2x16xf32>, vector<16x128xf32>, vector<2x128xf32> -> vector<2x128xf32>
      %130 = arith.addf %124, %129 : vector<2x128xf32>
      %c0_186 = arith.constant 0 : index
      %c2_187 = arith.constant 2 : index
      %c4_188 = arith.constant 4 : index
      %c0_189 = arith.constant 0 : index
      %131 = vector.load %arg7[%c0_186, %c2_187, %c4_188, %c0_189] : memref<2x3x8x16xf32, #tpu.memory_space<vmem>>, vector<2x1x1x16xf32>
      %132 = vector.shape_cast %131 : vector<2x1x1x16xf32> to vector<2x16xf32>
      %c2_190 = arith.constant 2 : index
      %c4_191 = arith.constant 4 : index
      %c0_192 = arith.constant 0 : index
      %c0_193 = arith.constant 0 : index
      %133 = vector.load %arg3[%c2_190, %c4_191, %c0_192, %c0_193] : memref<3x8x16x128xf32, #tpu.memory_space<vmem>>, vector<1x1x16x128xf32>
      %134 = vector.shape_cast %133 : vector<1x1x16x128xf32> to vector<16x128xf32>
      %cst_194 = arith.constant dense<0.000000e+00> : vector<2x128xf32>
      %135 = tpu.matmul %132, %134, %cst_194 {dimension_numbers = #tpu.dot_dimension_numbers<[1], [0], [0], [1], [0, 0, 1, 1], [], []>} : vector<2x16xf32>, vector<16x128xf32>, vector<2x128xf32> -> vector<2x128xf32>
      %136 = arith.addf %130, %135 : vector<2x128xf32>
      %c0_195 = arith.constant 0 : index
      %c2_196 = arith.constant 2 : index
      %c5_197 = arith.constant 5 : index
      %c0_198 = arith.constant 0 : index
      %137 = vector.load %arg7[%c0_195, %c2_196, %c5_197, %c0_198] : memref<2x3x8x16xf32, #tpu.memory_space<vmem>>, vector<2x1x1x16xf32>
      %138 = vector.shape_cast %137 : vector<2x1x1x16xf32> to vector<2x16xf32>
      %c2_199 = arith.constant 2 : index
      %c5_200 = arith.constant 5 : index
      %c0_201 = arith.constant 0 : index
      %c0_202 = arith.constant 0 : index
      %139 = vector.load %arg3[%c2_199, %c5_200, %c0_201, %c0_202] : memref<3x8x16x128xf32, #tpu.memory_space<vmem>>, vector<1x1x16x128xf32>
      %140 = vector.shape_cast %139 : vector<1x1x16x128xf32> to vector<16x128xf32>
      %cst_203 = arith.constant dense<0.000000e+00> : vector<2x128xf32>
      %141 = tpu.matmul %138, %140, %cst_203 {dimension_numbers = #tpu.dot_dimension_numbers<[1], [0], [0], [1], [0, 0, 1, 1], [], []>} : vector<2x16xf32>, vector<16x128xf32>, vector<2x128xf32> -> vector<2x128xf32>
      %142 = arith.addf %136, %141 : vector<2x128xf32>
      %c0_204 = arith.constant 0 : index
      %c2_205 = arith.constant 2 : index
      %c6_206 = arith.constant 6 : index
      %c0_207 = arith.constant 0 : index
      %143 = vector.load %arg7[%c0_204, %c2_205, %c6_206, %c0_207] : memref<2x3x8x16xf32, #tpu.memory_space<vmem>>, vector<2x1x1x16xf32>
      %144 = vector.shape_cast %143 : vector<2x1x1x16xf32> to vector<2x16xf32>
      %c2_208 = arith.constant 2 : index
      %c6_209 = arith.constant 6 : index
      %c0_210 = arith.constant 0 : index
      %c0_211 = arith.constant 0 : index
      %145 = vector.load %arg3[%c2_208, %c6_209, %c0_210, %c0_211] : memref<3x8x16x128xf32, #tpu.memory_space<vmem>>, vector<1x1x16x128xf32>
      %146 = vector.shape_cast %145 : vector<1x1x16x128xf32> to vector<16x128xf32>
      %cst_212 = arith.constant dense<0.000000e+00> : vector<2x128xf32>
      %147 = tpu.matmul %144, %146, %cst_212 {dimension_numbers = #tpu.dot_dimension_numbers<[1], [0], [0], [1], [0, 0, 1, 1], [], []>} : vector<2x16xf32>, vector<16x128xf32>, vector<2x128xf32> -> vector<2x128xf32>
      %148 = arith.addf %142, %147 : vector<2x128xf32>
      %c0_213 = arith.constant 0 : index
      %c2_214 = arith.constant 2 : index
      %c7_215 = arith.constant 7 : index
      %c0_216 = arith.constant 0 : index
      %149 = vector.load %arg7[%c0_213, %c2_214, %c7_215, %c0_216] : memref<2x3x8x16xf32, #tpu.memory_space<vmem>>, vector<2x1x1x16xf32>
      %150 = vector.shape_cast %149 : vector<2x1x1x16xf32> to vector<2x16xf32>
      %c2_217 = arith.constant 2 : index
      %c7_218 = arith.constant 7 : index
      %c0_219 = arith.constant 0 : index
      %c0_220 = arith.constant 0 : index
      %151 = vector.load %arg3[%c2_217, %c7_218, %c0_219, %c0_220] : memref<3x8x16x128xf32, #tpu.memory_space<vmem>>, vector<1x1x16x128xf32>
      %152 = vector.shape_cast %151 : vector<1x1x16x128xf32> to vector<16x128xf32>
      %cst_221 = arith.constant dense<0.000000e+00> : vector<2x128xf32>
      %153 = tpu.matmul %150, %152, %cst_221 {dimension_numbers = #tpu.dot_dimension_numbers<[1], [0], [0], [1], [0, 0, 1, 1], [], []>} : vector<2x16xf32>, vector<16x128xf32>, vector<2x128xf32> -> vector<2x128xf32>
      %154 = arith.addf %148, %153 : vector<2x128xf32>
      %c0_222 = arith.constant 0 : index
      %c0_223 = arith.constant 0 : index
      %155 = vector.load %arg4[%c0_222, %c0_223] : memref<128x128xf32, #tpu.memory_space<vmem>>, vector<128x128xf32>
      %cst_224 = arith.constant dense<0.000000e+00> : vector<2x128xf32>
      %156 = tpu.matmul %154, %155, %cst_224 {dimension_numbers = #tpu.dot_dimension_numbers<[1], [0], [0], [1], [0, 0, 1, 1], [], []>} : vector<2x128xf32>, vector<128x128xf32>, vector<2x128xf32> -> vector<2x128xf32>
      %c0_225 = arith.constant 0 : index
      %c0_226 = arith.constant 0 : index
      %157 = vector.load %arg5[%c0_225, %c0_226] : memref<1x128xf32, #tpu.memory_space<vmem>>, vector<1x128xf32>
      %158 = vector.broadcast %157 : vector<1x128xf32> to vector<2x128xf32>
      %159 = arith.addf %156, %158 : vector<2x128xf32>
      %c0_227 = arith.constant 0 : index
      %c0_228 = arith.constant 0 : index
      %160 = vector.load %arg6[%c0_227, %c0_228] : memref<2x128xf32, #tpu.memory_space<vmem>>, vector<2x128xf32>
      tpu.vector_store %arg6[%c0_227, %c0_228], %159 {strides = array<i32>} : memref<2x128xf32, #tpu.memory_space<vmem>>, vector<2x128xf32>,
    } else {
    }
    return
  }
  func.func @transform_0(%arg0: i32, %arg1: i32) -> (i32, i32, i32, i32) {
    %c0_i32 = arith.constant 0 : i32
    %c0_i32_0 = arith.constant 0 : i32
    %c0_i32_1 = arith.constant 0 : i32
    return %arg0, %c0_i32, %arg1, %c0_i32_0 : i32, i32, i32, i32
  }
  func.func @transform_1(%arg0: i32, %arg1: i32) -> (i32, i32, i32, i32) {
    %c0_i32 = arith.constant 0 : i32
    %c0_i32_0 = arith.constant 0 : i32
    %c0_i32_1 = arith.constant 0 : i32
    %c0_i32_2 = arith.constant 0 : i32
    %c0_i32_3 = arith.constant 0 : i32
    return %c0_i32, %c0_i32_0, %c0_i32_1, %c0_i32_2 : i32, i32, i32, i32
  }
  func.func @transform_2(%arg0: i32, %arg1: i32) -> (i32, i32) {
    %c0_i32 = arith.constant 0 : i32
    %c0_i32_0 = arith.constant 0 : i32
    %c0_i32_1 = arith.constant 0 : i32
    return %c0_i32, %c0_i32_0 : i32, i32
  }
  func.func @transform_3(%arg0: i32, %arg1: i32) -> (i32, i32) {
    %c0_i32 = arith.constant 0 : i32
    %c0_i32_0 = arith.constant 0 : i32
    %c0_i32_1 = arith.constant 0 : i32
    return %c0_i32, %c0_i32_0 : i32, i32
  }
  func.func @transform_4(%arg0: i32, %arg1: i32) -> (i32, i32) {
    %c0_i32 = arith.constant 0 : i32
    %c0_i32_0 = arith.constant 0 : i32
    return %arg0, %c0_i32 : i32, i32
  }
}

</mosaic_0001>

<llo_original>
// kernel: tpu_custom_call.1
$region0: #{tpu_custom_call.1}
  #allocation0 [shape = 'u32[]', space=smem, size = 0x4, offset = 0x4, fixed_abs, tag = 'smem constant byte address 0x4 - core index']
  #allocation1 [shape = 'u32[144,128]{1,0:T(1,128)}', space=vmem, size = 0x12000, scoped, tag = 'internal scratch']
  #allocation2 [shape = 'f32[2,3,8,16]{3,2,1,0:T(8,128)}', space=vmem, size = 0x6000, scoped, tag = 'scratch operand']
  %s0 = inlined_call_operand.hbm [shape: f32[2,3,16,16], index: 0, kind: input, shape index: {}]
  %s1 = inlined_call_operand.hbm [shape: f32[3,8,16,128], index: 1, kind: input, shape index: {}]
  %s2 = inlined_call_operand.hbm [shape: f32[128,128], index: 2, kind: input, shape index: {}]
  %s3 = inlined_call_operand.vmem [shape: f32[1,128], index: 3, kind: input, shape index: {}]
  %s4 = inlined_call_operand.hbm [shape: f32[2,128], index: 4, kind: output, shape index: {}]
  %s5 = sld [smem:[#allocation0]]
  $region69: #{tpu_custom_call.1} parent=0
    _
  %s7 = ssub.s32 1, %s5
  %s8 = scalar_select 0, %s7, %s5
  $region1: #{tpu_custom_call.1} parent=0
    #allocation3 [shape = 'u8[49152]{0}', space=vmem, size = 0xc000, scoped, tag = 'input window, operand 0']
    #allocation4 [shape = 's32[2]{0}', space=sflag, size = 0x8, scoped, tag = 'scoped memory for tpu_custom_call.1']
    #allocation5 [shape = 's32[2]{0}', space=sflag, size = 0x8, scoped, tag = 'scoped memory for tpu_custom_call.1']
    #allocation6 [shape = 'u8[196608]{0}', space=vmem, size = 0x30000, scoped, tag = 'input window, operand 1, single buffered']
    #allocation7 [shape = 's32[1]{0}', space=sflag, size = 0x4, scoped, tag = 'scoped memory for tpu_custom_call.1']
    #allocation8 [shape = 'u8[65536]{0}', space=vmem, size = 0x10000, scoped, tag = 'input window, operand 2, single buffered']
    #allocation9 [shape = 'u8[1024]{0}', space=vmem, size = 0x400, scoped, tag = 'output window, operand 0, single buffered']
    %9 = vsyncpa [#allocation4], 0
    %s10 = scalar_lea.sflag [#allocation4], 1
    %11 = vsyncpa %s10, 0
    %12 = vsyncpa [#allocation7], 0
    %13 = vsyncpa [#allocation5], 0
    loop: start=0, step=1, limit=4
    $region2: #{tpu_custom_call.1} parent=1 // loop_pre_header
      _
    $region3: #{tpu_custom_call.1} parent=1 // loop_header
      %s15 = sphi 0, %s19
      %p16 = scmp.ge.s32.totalorder %s15, 4
      %s22 = sphi 0, %s34
      %s23 = sphi 0, %s30
      %s24 = sphi 0, %s22
      %s25 = sphi 0, %s23
      %s26 = sphi 0, %s24
      %s27 = sphi 0, %s25
      %s39 = sphi 0, %s41
      %s42 = sphi 0, %s39
      %s43 = sphi 0, %s42
      %s59 = sphi 0, %s43
      %s63 = sphi 0, %s63
      %s65 = sphi 0, %s63
      %s66 = sphi 0, %s65
      %s80 = sphi 0, %s66
      %s84 = sphi 0, %s84
      %s86 = sphi 0, %s84
      %s87 = sphi 0, %s86
      %s101 = sphi 0, %s87
      %s105 = sphi 0, %s105
      %s107 = sphi 0, %s105
      %s108 = sphi 0, %s107
      %s122 = sphi 0, %s108
      %s128 = sphi 0, %s130
      %s131 = sphi 0, %s128
      %s132 = sphi 0, %s131
      %s148 = sphi 0, %s132
    $region4: #{tpu_custom_call.1} parent=1 // loop_header_branch
      %18 = sbr.rel (%p16) target = $region8
    $region5: #{tpu_custom_call.1} parent=1 // loop_body
      %s20 = ssub.s32 %s15, 1
      %s21 = ssub.s32 %s15, 2
      %s28 = sadd.s32 1, %s23
      %p29 = scmp.ge.s32.totalorder %s28, 2
      %s30 = scalar_select %p29, 0, %s28
      %s31 = sadd.s32 1, %s22
      %s32 = scalar_select %p29, %s31, %s22
      %p33 = scmp.ge.s32.totalorder %s32, 1
      %s34 = scalar_select %p33, 0, %s32
      %s35 = ssub.s32 %s22, %s34
      %s36 = ssub.s32 %s23, %s30
      %s37 = sor.u32 %s35, %s36
      %p38 = scmp.eq.s32.totalorder %s37, 0
      %s40 = sadd.s32 %s39, 1
      %s41 = scalar_select %p38, %s39, %s40
      %p44 = pneg %p38
      %p45 = scmp.eq.s32.totalorder %s15, 1
      %p46 = por %p44, %p45
      %p47 = scmp.ne.s32.totalorder %s39, %s42
      %p48 = scmp.eq.s32.totalorder %s15, 0
      %p49 = por %p47, %p48
      %p50 = scmp.ne.s32.totalorder %s39, %s42
      %p51 = scmp.eq.s32.totalorder %s20, 1
      %p52 = por %p50, %p51
      %p53 = scmp.ne.s32.totalorder %s42, %s43
      %p54 = scmp.eq.s32.totalorder %s20, 0
      %p55 = por %p53, %p54
      %p56 = scmp.ne.s32.totalorder %s42, %s43
      %p57 = scmp.eq.s32.totalorder %s21, 1
      %p58 = por %p56, %p57
      %p60 = scmp.ne.s32.totalorder %s43, %s59
      %p61 = scmp.eq.s32.totalorder %s21, 0
      %p62 = por %p60, %p61
      %s64 = sadd.s32 %s63, 1
      %p67 = scmp.eq.s32.totalorder %s15, 1
      %p68 = scmp.ne.s32.totalorder %s63, %s65
      %p69 = scmp.eq.s32.totalorder %s15, 0
      %p70 = por %p68, %p69
      %p71 = scmp.ne.s32.totalorder %s63, %s65
      %p72 = scmp.eq.s32.totalorder %s20, 1
      %p73 = por %p71, %p72
      %p74 = scmp.ne.s32.totalorder %s65, %s66
      %p75 = scmp.eq.s32.totalorder %s20, 0
      %p76 = por %p74, %p75
      %p77 = scmp.ne.s32.totalorder %s65, %s66
      %p78 = scmp.eq.s32.totalorder %s21, 1
      %p79 = por %p77, %p78
      %p81 = scmp.ne.s32.totalorder %s66, %s80
      %p82 = scmp.eq.s32.totalorder %s21, 0
      %p83 = por %p81, %p82
      %s85 = sadd.s32 %s84, 1
      %p88 = scmp.eq.s32.totalorder %s15, 1
      %p89 = scmp.ne.s32.totalorder %s84, %s86
      %p90 = scmp.eq.s32.totalorder %s15, 0
      %p91 = por %p89, %p90
      %p92 = scmp.ne.s32.totalorder %s84, %s86
      %p93 = scmp.eq.s32.totalorder %s20, 1
      %p94 = por %p92, %p93
      %p95 = scmp.ne.s32.totalorder %s86, %s87
      %p96 = scmp.eq.s32.totalorder %s20, 0
      %p97 = por %p95, %p96
      %p98 = scmp.ne.s32.totalorder %s86, %s87
      %p99 = scmp.eq.s32.totalorder %s21, 1
      %p100 = por %p98, %p99
      %p102 = scmp.ne.s32.totalorder %s87, %s101
      %p103 = scmp.eq.s32.totalorder %s21, 0
      %p104 = por %p102, %p103
      %s106 = sadd.s32 %s105, 1
      %p109 = scmp.eq.s32.totalorder %s15, 1
      %p110 = scmp.ne.s32.totalorder %s105, %s107
      %p111 = scmp.eq.s32.totalorder %s15, 0
      %p112 = por %p110, %p111
      %p113 = scmp.ne.s32.totalorder %s105, %s107
      %p114 = scmp.eq.s32.totalorder %s20, 1
      %p115 = por %p113, %p114
      %p116 = scmp.ne.s32.totalorder %s107, %s108
      %p117 = scmp.eq.s32.totalorder %s20, 0
      %p118 = por %p116, %p117
      %p119 = scmp.ne.s32.totalorder %s107, %s108
      %p120 = scmp.eq.s32.totalorder %s21, 1
      %p121 = por %p119, %p120
      %p123 = scmp.ne.s32.totalorder %s108, %s122
      %p124 = scmp.eq.s32.totalorder %s21, 0
      %p125 = por %p123, %p124
      %s126 = ssub.s32 %s22, %s34
      %p127 = scmp.eq.s32.totalorder %s126, 0
      %s129 = sadd.s32 %s128, 1
      %s130 = scalar_select %p127, %s128, %s129
      %p133 = pneg %p127
      %p134 = scmp.eq.s32.totalorder %s15, 1
      %p135 = por %p133, %p134
      %p136 = scmp.ne.s32.totalorder %s128, %s131
      %p137 = scmp.eq.s32.totalorder %s15, 0
      %p138 = por %p136, %p137
      %p139 = scmp.ne.s32.totalorder %s128, %s131
      %p140 = scmp.eq.s32.totalorder %s20, 1
      %p141 = por %p139, %p140
      %p142 = scmp.ne.s32.totalorder %s131, %s132
      %p143 = scmp.eq.s32.totalorder %s20, 0
      %p144 = por %p142, %p143
      %p145 = scmp.ne.s32.totalorder %s131, %s132
      %p146 = scmp.eq.s32.totalorder %s21, 1
      %p147 = por %p145, %p146
      %p149 = scmp.ne.s32.totalorder %s132, %s148
      %p150 = scmp.eq.s32.totalorder %s21, 0
      %p151 = por %p149, %p150
      %p152 = scmp.le.s32.totalorder 1, %s15
      %p153 = scmp.lt.s32.totalorder %s15, 3
      %p154 = pnand %p152, %p153
      %p155 = pneg %p154
      // Predicated region
      $region9: #{tpu_custom_call.1} parent=5 // pred_check
        _
      $region10: #{tpu_custom_call.1} parent=5 // pred_check_branch
        %157 = sbr.rel (%p154) target = $region12
      $region11: #{tpu_custom_call.1} parent=5 // pred_region
        %s158 = ssub.s32 %s15, 1
        // Predicated region
        $region13: #{tpu_custom_call.1} parent=11 // pred_check
          %p159 = pneg %p76
        $region14: #{tpu_custom_call.1} parent=11 // pred_check_branch
          %161 = sbr.rel (%p159) target = $region16
        $region15: #{tpu_custom_call.1} parent=11 // pred_region
          %s163 = ssub.s32 6144, 6144
          %164 = vsyncadd [#allocation7], %s163
          %s165 = sshll.u32 [#allocation6], 4
          %s166 = int_to_ptr.vmem [resolvable:$true] %s165
          %171 = dma.hbm_to_vmem [thread:$0]  %s1, 6144, %s166, [#allocation7], 128, 128, 8
        $region16: #{tpu_custom_call.1} parent=11 // pred_fallthru
          _
        // Predicated region
        $region17: #{tpu_custom_call.1} parent=11 // pred_check
          %p172 = pneg %p97
        $region18: #{tpu_custom_call.1} parent=11 // pred_check_branch
          %174 = sbr.rel (%p172) target = $region20
        $region19: #{tpu_custom_call.1} parent=11 // pred_region
          %s176 = ssub.s32 2048, 2048
          %177 = vsyncadd [#allocation7], %s176
          %s178 = sshll.u32 [#allocation8], 4
          %s179 = int_to_ptr.vmem [resolvable:$true] %s178
          %184 = dma.hbm_to_vmem [thread:$0]  %s2, 2048, %s179, [#allocation7], 128, 128, 8
        $region20: #{tpu_custom_call.1} parent=11 // pred_fallthru
          _
        // Predicated region
        $region21: #{tpu_custom_call.1} parent=11 // pred_check
          %p185 = pneg %p118
        $region22: #{tpu_custom_call.1} parent=11 // pred_check_branch
          %187 = sbr.rel (%p185) target = $region24
        $region23: #{tpu_custom_call.1} parent=11 // pred_region
          _
        $region24: #{tpu_custom_call.1} parent=11 // pred_fallthru
          _
      $region12: #{tpu_custom_call.1} parent=5 // pred_fallthru
        _
      %p188 = scmp.lt.s32.totalorder %s15, 2
      // Predicated region
      $region25: #{tpu_custom_call.1} parent=5 // pred_check
        %p189 = pneg %p188
      $region26: #{tpu_custom_call.1} parent=5 // pred_check_branch
        %191 = sbr.rel (%p189) target = $region28
      $region27: #{tpu_custom_call.1} parent=5 // pred_region
        // Predicated region
        $region29: #{tpu_custom_call.1} parent=27 // pred_check
          %p192 = pneg %p49
        $region30: #{tpu_custom_call.1} parent=27 // pred_check_branch
          %194 = sbr.rel (%p192) target = $region32
        $region31: #{tpu_custom_call.1} parent=27 // pred_region
          %s195 = sand.u32 %s39, 1
          %s196 = scalar_lea.sflag [#allocation4], %s195
          %s197 = sand.u32 %s39, 1
          %s198 = smul.addr %s197, 48
          %s199 = scalar_lea.vmem [#allocation3], %s198
          %s200 = smul.u32 2, %s22
          %s202 = ssub.s32 768, 768
          %203 = vsyncadd %s196, %s202
          %s204 = smul.addr %s200, 6
          %s205 = sadd.s32 %s23, %s204
          %s206 = smul.addr %s205, 128
          %s207 = scalar_lea.hbm %s0, %s206
          %s208 = sshll.u32 %s199, 4
          %s209 = int_to_ptr.vmem [resolvable:$true] %s208
          %214 = dma.hbm_to_vmem [thread:$0]  %s207, 768, %s209, %s196, 256, 128, 8
        $region32: #{tpu_custom_call.1} parent=27 // pred_fallthru
          _
      $region28: #{tpu_custom_call.1} parent=5 // pred_fallthru
        _
      %p215 = scmp.le.s32.totalorder 1, %s15
      %p216 = scmp.lt.s32.totalorder %s15, 3
      %p217 = pnand %p215, %p216
      %p218 = pneg %p217
      // Predicated region
      $region33: #{tpu_custom_call.1} parent=5 // pred_check
        _
      $region34: #{tpu_custom_call.1} parent=5 // pred_check_branch
        %220 = sbr.rel (%p217) target = $region36
      $region35: #{tpu_custom_call.1} parent=5 // pred_region
        %s221 = ssub.s32 %s15, 1
        %s222 = sand.u32 %s42, 1
        %s223 = scalar_lea.sflag [#allocation4], %s222
        %s224 = sand.u32 %s42, 1
        %s225 = smul.addr %s224, 48
        %s226 = scalar_lea.vmem [#allocation3], %s225
        // Predicated region
        $region37: #{tpu_custom_call.1} parent=35 // pred_check
          %p227 = pneg %p55
        $region38: #{tpu_custom_call.1} parent=35 // pred_check_branch
          %229 = sbr.rel (%p227) target = $region40
        $region39: #{tpu_custom_call.1} parent=35 // pred_region
          %230 = dma.done %s223, 768
        $region40: #{tpu_custom_call.1} parent=35 // pred_fallthru
          _
        // Predicated region
        $region41: #{tpu_custom_call.1} parent=35 // pred_check
          %p231 = pneg %p76
        $region42: #{tpu_custom_call.1} parent=35 // pred_check_branch
          %233 = sbr.rel (%p231) target = $region44
        $region43: #{tpu_custom_call.1} parent=35 // pred_region
          %234 = dma.done [#allocation7], 6144
        $region44: #{tpu_custom_call.1} parent=35 // pred_fallthru
          _
        // Predicated region
        $region45: #{tpu_custom_call.1} parent=35 // pred_check
          %p235 = pneg %p97
        $region46: #{tpu_custom_call.1} parent=35 // pred_check_branch
          %237 = sbr.rel (%p235) target = $region48
        $region47: #{tpu_custom_call.1} parent=35 // pred_region
          %238 = dma.done [#allocation7], 2048
        $region48: #{tpu_custom_call.1} parent=35 // pred_fallthru
          _
        %s239 = sand.u32 %s42, 1
        %s240 = scalar_lea.sflag [#allocation4], %s239
        %s241 = sand.u32 %s42, 1
        %s242 = smul.addr %s241, 48
        %s243 = scalar_lea.vmem [#allocation3], %s242
        %p244 = pneg %p55
        %p245 = pneg %p52
        %p246 = pneg %p76
        %p247 = pneg %p73
        %p248 = pneg %p97
        %p249 = pneg %p94
        %p250 = pneg %p118
        %p251 = pneg %p115
        %p252 = pneg %p144
        %p253 = pneg %p141
        %s254 = smul.u32 2, %s24
        %p255 = scmp.eq.s32.totalorder %s25, 0
        // Predicated region
        $region49: #{tpu_custom_call.1} parent=35 // pred_check
          %p256 = pneg %p255
        $region50: #{tpu_custom_call.1} parent=35 // pred_check_branch
          %258 = sbr.rel (%p256) target = $region52
        $region51: #{tpu_custom_call.1} parent=35 // pred_region
          %vm259 = vcmask 130048
          %260 = vst.msk [vmem:[#allocation2] sm:$0xff] %vm259, 0.0
          %261 = vst.msk [vmem:[#allocation2 + $0x8] sm:$0xff] %vm259, 0.0
          %262 = vst.msk [vmem:[#allocation2 + $0x10] sm:$0xff] %vm259, 0.0
          %263 = vst.msk [vmem:[#allocation2 + $0x18] sm:$0xff] %vm259, 0.0
          %264 = vst.msk [vmem:[#allocation2 + $0x20] sm:$0xff] %vm259, 0.0
          %265 = vst.msk [vmem:[#allocation2 + $0x28] sm:$0xff] %vm259, 0.0
        $region52: #{tpu_custom_call.1} parent=35 // pred_fallthru
          _
        %v266 = vld [vmem:[%s226] sm:$0xff]
        %v267 = vld [vmem:[%s226 + $0x8] sm:$0xff]
        %v268 = vld [vmem:[%s226 + $0x10] sm:$0xff]
        %v269 = vld [vmem:[%s226 + $0x18] sm:$0xff]
        %v270 = vld [vmem:[%s226 + $0x20] sm:$0xff]
        %v271 = vld [vmem:[%s226 + $0x28] sm:$0xff]
        %v272 = vld [vmem:[#allocation2] sm:$0xff]
        %v273 = vld [vmem:[#allocation2 + $0x8] sm:$0xff]
        %v274 = vld [vmem:[#allocation2 + $0x10] sm:$0xff]
        %v275 = vld [vmem:[#allocation2 + $0x18] sm:$0xff]
        %v276 = vld [vmem:[#allocation2 + $0x20] sm:$0xff]
        %v277 = vld [vmem:[#allocation2 + $0x28] sm:$0xff]
        %v278 = vadd.f32 %v272, %v266
        %v279 = vadd.f32 %v273, %v267
        %v280 = vadd.f32 %v274, %v268
        %v281 = vadd.f32 %v275, %v269
        %v282 = vadd.f32 %v276, %v270
        %v283 = vadd.f32 %v277, %v271
        %vm284 = vcmask 130048
        %285 = vst.msk [vmem:[#allocation2] sm:$0xff] %vm284, %v278
        %286 = vst.msk [vmem:[#allocation2 + $0x8] sm:$0xff] %vm284, %v279
        %287 = vst.msk [vmem:[#allocation2 + $0x10] sm:$0xff] %vm284, %v280
        %288 = vst.msk [vmem:[#allocation2 + $0x18] sm:$0xff] %vm284, %v281
        %289 = vst.msk [vmem:[#allocation2 + $0x20] sm:$0xff] %vm284, %v282
        %290 = vst.msk [vmem:[#allocation2 + $0x28] sm:$0xff] %vm284, %v283
        %p291 = scmp.eq.s32.totalorder %s25, 1
        // Predicated region
        $region53: #{tpu_custom_call.1} parent=35 // pred_check
          %p292 = pneg %p291
        $region54: #{tpu_custom_call.1} parent=35 // pred_check_branch
          %294 = sbr.rel (%p292) target = $region56
        $region55: #{tpu_custom_call.1} parent=35 // pred_region
          %v295 = vld [vmem:[#allocation2] sm:$0x1]
          %v296 = vld [vmem:[#allocation2 + $0x18] sm:$0x1]
          %v297 = vld [vmem:[#allocation6] sm:$0xff]
          %v298 = vld [vmem:[#allocation6 + $0x8] sm:$0xff]
          %v299 = vld [vmem:[#allocation2 + $0x1] sm:$0x1]
          %v300 = vld [vmem:[#allocation2 + $0x19] sm:$0x1]
          %s301 = scalar_lea.vmem [#allocation6], 16
          %v302 = vld [vmem:[%s301] sm:$0xff]
          %v303 = vld [vmem:[%s301 + $0x8] sm:$0xff]
          %v306 = vrot.slane %v300, 7
          %vm307 = vcmask 1041409
          %v308 = vsel %vm307, %v306, %v299
          %v309 = vsel %vm284, %v308, 0
          %311 = vmatprep.subr.mxu0 0.0
          %312 = vmatpush1.msra.mxu0 %v302
          %313 = vmatprep.subr.mxu0 0.0
          %314 = vmatpush1.msra.mxu0 %v303
          %315 = vmatprep.subr.mxu0 0.0
          %316 = vmatpush1.msra.mxu0 0.0
          %317 = vmatprep.subr.mxu0 0.0
          %318 = vmatpush1.msra.mxu0 0.0
          %319 = vmatprep.subr.mxu0 0.0
          %320 = vmatpush1.msra.mxu0 0.0
          %321 = vmatprep.subr.mxu0 0.0
          %322 = vmatpush1.msra.mxu0 0.0
          %323 = vmatprep.subr.mxu0 0.0
          %324 = vmatpush1.msra.mxu0 0.0
          %325 = vmatprep.subr.mxu0 0.0
          %326 = vmatpush1.msra.mxu0 0.0
          %327 = vmatprep.subr.mxu0 0.0
          %328 = vmatpush1.msra.mxu0 0.0
          %329 = vmatprep.subr.mxu0 0.0
          %330 = vmatpush1.msra.mxu0 0.0
          %331 = vmatprep.subr.mxu0 0.0
          %332 = vmatpush1.msra.mxu0 0.0
          %333 = vmatprep.subr.mxu0 0.0
          %334 = vmatpush1.msra.mxu0 0.0
          %335 = vmatprep.subr.mxu0 0.0
          %336 = vmatpush1.msra.mxu0 0.0
          %337 = vmatprep.subr.mxu0 0.0
          %338 = vmatpush1.msra.mxu0 0.0
          %339 = vmatprep.subr.mxu0 0.0
          %340 = vmatpush1.msra.mxu0 0.0
          %341 = vmatprep.subr.mxu0 0.0
          %342 = vmatpush1.msra.mxu0 0.0
          %343 = vmatprep.subr.mxu0 0.0
          %344 = vmatpush1.msra.mxu0 0.0
          %345 = vmatprep.subr.mxu0 0.0
          %346 = vmatpush1.msra.mxu0 0.0
          %347 = vmatprep.subr.mxu0 0.0
          %348 = vmatpush1.msra.mxu0 0.0
          %349 = vmatprep.subr.mxu0 0.0
          %350 = vmatpush1.msra.mxu0 0.0
          %351 = vmatprep.subr.mxu0 0.0
          %352 = vmatpush1.msra.mxu0 0.0
          %353 = vmatprep.subr.mxu0 0.0
          %354 = vmatpush1.msra.mxu0 0.0
          %355 = vmatprep.subr.mxu0 0.0
          %356 = vmatpush1.msra.mxu0 0.0
          %357 = vmatprep.subr.mxu0 0.0
          %358 = vmatpush1.msra.mxu0 0.0
          %359 = vmatprep.subr.mxu0 0.0
          %360 = vmatpush1.msra.mxu0 0.0
          %361 = vmatprep.subr.mxu0 0.0
          %362 = vmatpush1.msra.mxu0 0.0
          %363 = vmatprep.subr.mxu0 0.0
          %364 = vmatpush1.msra.mxu0 0.0
          %365 = vmatprep.subr.mxu0 0.0
          %366 = vmatpush1.msra.mxu0 0.0
          %367 = vmatprep.subr.mxu0 0.0
          %368 = vmatpush1.msra.mxu0 0.0
          %369 = vmatprep.subr.mxu0 0.0
          %370 = vmatpush1.msra.mxu0 0.0
          %371 = vmatprep.subr.mxu0 0.0
          %372 = vmatpush1.msra.mxu0 0.0
          %373 = vmatprep.subr.mxu0 0.0
          %374 = vmatpush1.msra.mxu0 0.0
          %375 = vmatprep.mubr.f32.mxu0 0.0
          %376 = vmatmul.mubr.f32.gmra.mrb[0].mxu0 %v309
          %v377 = vpop.f32.mrb[0].mxu0
          %v378 = vadd.f32 0.0, %v377
          %v379 = vpop.f32.mrb[0].mxu0
          %380 = vdwg.mxu0
          %v383 = vrot.slane %v296, 7
          %v384 = vsel %vm307, %v383, %v295
          %v385 = vsel %vm284, %v384, 0
          %387 = vmatprep.subr.mxu0 0.0
          %388 = vmatpush1.msra.mxu0 %v297
          %389 = vmatprep.subr.mxu0 0.0
          %390 = vmatpush1.msra.mxu0 %v298
          %391 = vmatprep.subr.mxu0 0.0
          %392 = vmatpush1.msra.mxu0 0.0
          %393 = vmatprep.subr.mxu0 0.0
          %394 = vmatpush1.msra.mxu0 0.0
          %395 = vmatprep.subr.mxu0 0.0
          %396 = vmatpush1.msra.mxu0 0.0
          %397 = vmatprep.subr.mxu0 0.0
          %398 = vmatpush1.msra.mxu0 0.0
          %399 = vmatprep.subr.mxu0 0.0
          %400 = vmatpush1.msra.mxu0 0.0
          %401 = vmatprep.subr.mxu0 0.0
          %402 = vmatpush1.msra.mxu0 0.0
          %403 = vmatprep.subr.mxu0 0.0
          %404 = vmatpush1.msra.mxu0 0.0
          %405 = vmatprep.subr.mxu0 0.0
          %406 = vmatpush1.msra.mxu0 0.0
          %407 = vmatprep.subr.mxu0 0.0
          %408 = vmatpush1.msra.mxu0 0.0
          %409 = vmatprep.subr.mxu0 0.0
          %410 = vmatpush1.msra.mxu0 0.0
          %411 = vmatprep.subr.mxu0 0.0
          %412 = vmatpush1.msra.mxu0 0.0
          %413 = vmatprep.subr.mxu0 0.0
          %414 = vmatpush1.msra.mxu0 0.0
          %415 = vmatprep.subr.mxu0 0.0
          %416 = vmatpush1.msra.mxu0 0.0
          %417 = vmatprep.subr.mxu0 0.0
          %418 = vmatpush1.msra.mxu0 0.0
          %419 = vmatprep.subr.mxu0 0.0
          %420 = vmatpush1.msra.mxu0 0.0
          %421 = vmatprep.subr.mxu0 0.0
          %422 = vmatpush1.msra.mxu0 0.0
          %423 = vmatprep.subr.mxu0 0.0
          %424 = vmatpush1.msra.mxu0 0.0
          %425 = vmatprep.subr.mxu0 0.0
          %426 = vmatpush1.msra.mxu0 0.0
          %427 = vmatprep.subr.mxu0 0.0
          %428 = vmatpush1.msra.mxu0 0.0
          %429 = vmatprep.subr.mxu0 0.0
          %430 = vmatpush1.msra.mxu0 0.0
          %431 = vmatprep.subr.mxu0 0.0
          %432 = vmatpush1.msra.mxu0 0.0
          %433 = vmatprep.subr.mxu0 0.0
          %434 = vmatpush1.msra.mxu0 0.0
          %435 = vmatprep.subr.mxu0 0.0
          %436 = vmatpush1.msra.mxu0 0.0
          %437 = vmatprep.subr.mxu0 0.0
          %438 = vmatpush1.msra.mxu0 0.0
          %439 = vmatprep.subr.mxu0 0.0
          %440 = vmatpush1.msra.mxu0 0.0
          %441 = vmatprep.subr.mxu0 0.0
          %442 = vmatpush1.msra.mxu0 0.0
          %443 = vmatprep.subr.mxu0 0.0
          %444 = vmatpush1.msra.mxu0 0.0
          %445 = vmatprep.subr.mxu0 0.0
          %446 = vmatpush1.msra.mxu0 0.0
          %447 = vmatprep.subr.mxu0 0.0
          %448 = vmatpush1.msra.mxu0 0.0
          %449 = vmatprep.subr.mxu0 0.0
          %450 = vmatpush1.msra.mxu0 0.0
          %451 = vmatprep.mubr.f32.mxu0 0.0
          %452 = vmatmul.mubr.f32.gmra.mrb[0].mxu0 %v385
          %v453 = vpop.f32.mrb[0].mxu0
          %v454 = vadd.f32 %v378, %v453
          %v455 = vpop.f32.mrb[0].mxu0
          %456 = vdwg.mxu0
          %v457 = vld [vmem:[#allocation2 + $0x2] sm:$0x1]
          %v458 = vld [vmem:[#allocation2 + $0x1a] sm:$0x1]
          %s459 = scalar_lea.vmem [#allocation6], 32
          %v460 = vld [vmem:[%s459] sm:$0xff]
          %v461 = vld [vmem:[%s459 + $0x8] sm:$0xff]
          %v464 = vrot.slane %v458, 7
          %v465 = vsel %vm307, %v464, %v457
          %v466 = vsel %vm284, %v465, 0
          %468 = vmatprep.subr.mxu0 0.0
          %469 = vmatpush1.msra.mxu0 %v460
          %470 = vmatprep.subr.mxu0 0.0
          %471 = vmatpush1.msra.mxu0 %v461
          %472 = vmatprep.subr.mxu0 0.0
          %473 = vmatpush1.msra.mxu0 0.0
          %474 = vmatprep.subr.mxu0 0.0
          %475 = vmatpush1.msra.mxu0 0.0
          %476 = vmatprep.subr.mxu0 0.0
          %477 = vmatpush1.msra.mxu0 0.0
          %478 = vmatprep.subr.mxu0 0.0
          %479 = vmatpush1.msra.mxu0 0.0
          %480 = vmatprep.subr.mxu0 0.0
          %481 = vmatpush1.msra.mxu0 0.0
          %482 = vmatprep.subr.mxu0 0.0
          %483 = vmatpush1.msra.mxu0 0.0
          %484 = vmatprep.subr.mxu0 0.0
          %485 = vmatpush1.msra.mxu0 0.0
          %486 = vmatprep.subr.mxu0 0.0
          %487 = vmatpush1.msra.mxu0 0.0
          %488 = vmatprep.subr.mxu0 0.0
          %489 = vmatpush1.msra.mxu0 0.0
          %490 = vmatprep.subr.mxu0 0.0
          %491 = vmatpush1.msra.mxu0 0.0
          %492 = vmatprep.subr.mxu0 0.0
          %493 = vmatpush1.msra.mxu0 0.0
          %494 = vmatprep.subr.mxu0 0.0
          %495 = vmatpush1.msra.mxu0 0.0
          %496 = vmatprep.subr.mxu0 0.0
          %497 = vmatpush1.msra.mxu0 0.0
          %498 = vmatprep.subr.mxu0 0.0
          %499 = vmatpush1.msra.mxu0 0.0
          %500 = vmatprep.subr.mxu0 0.0
          %501 = vmatpush1.msra.mxu0 0.0
          %502 = vmatprep.subr.mxu0 0.0
          %503 = vmatpush1.msra.mxu0 0.0
          %504 = vmatprep.subr.mxu0 0.0
          %505 = vmatpush1.msra.mxu0 0.0
          %506 = vmatprep.subr.mxu0 0.0
          %507 = vmatpush1.msra.mxu0 0.0
          %508 = vmatprep.subr.mxu0 0.0
          %509 = vmatpush1.msra.mxu0 0.0
          %510 = vmatprep.subr.mxu0 0.0
          %511 = vmatpush1.msra.mxu0 0.0
          %512 = vmatprep.subr.mxu0 0.0
          %513 = vmatpush1.msra.mxu0 0.0
          %514 = vmatprep.subr.mxu0 0.0
          %515 = vmatpush1.msra.mxu0 0.0
          %516 = vmatprep.subr.mxu0 0.0
          %517 = vmatpush1.msra.mxu0 0.0
          %518 = vmatprep.subr.mxu0 0.0
          %519 = vmatpush1.msra.mxu0 0.0
          %520 = vmatprep.subr.mxu0 0.0
          %521 = vmatpush1.msra.mxu0 0.0
          %522 = vmatprep.subr.mxu0 0.0
          %523 = vmatpush1.msra.mxu0 0.0
          %524 = vmatprep.subr.mxu0 0.0
          %525 = vmatpush1.msra.mxu0 0.0
          %526 = vmatprep.subr.mxu0 0.0
          %527 = vmatpush1.msra.mxu0 0.0
          %528 = vmatprep.subr.mxu0 0.0
          %529 = vmatpush1.msra.mxu0 0.0
          %530 = vmatprep.subr.mxu0 0.0
          %531 = vmatpush1.msra.mxu0 0.0
          %532 = vmatprep.mubr.f32.mxu0 0.0
          %533 = vmatmul.mubr.f32.gmra.mrb[0].mxu0 %v466
          %v534 = vpop.f32.mrb[0].mxu0
          %v535 = vadd.f32 0.0, %v534
          %v536 = vpop.f32.mrb[0].mxu0
          %537 = vdwg.mxu0
          %v538 = vadd.f32 %v454, %v535
          %v539 = vld [vmem:[#allocation2 + $0x3] sm:$0x1]
          %v540 = vld [vmem:[#allocation2 + $0x1b] sm:$0x1]
          %s541 = scalar_lea.vmem [#allocation6], 48
          %v542 = vld [vmem:[%s541] sm:$0xff]
          %v543 = vld [vmem:[%s541 + $0x8] sm:$0xff]
          %v546 = vrot.slane %v540, 7
          %v547 = vsel %vm307, %v546, %v539
          %v548 = vsel %vm284, %v547, 0
          %550 = vmatprep.subr.mxu0 0.0
          %551 = vmatpush1.msra.mxu0 %v542
          %552 = vmatprep.subr.mxu0 0.0
          %553 = vmatpush1.msra.mxu0 %v543
          %554 = vmatprep.subr.mxu0 0.0
          %555 = vmatpush1.msra.mxu0 0.0
          %556 = vmatprep.subr.mxu0 0.0
          %557 = vmatpush1.msra.mxu0 0.0
          %558 = vmatprep.subr.mxu0 0.0
          %559 = vmatpush1.msra.mxu0 0.0
          %560 = vmatprep.subr.mxu0 0.0
          %561 = vmatpush1.msra.mxu0 0.0
          %562 = vmatprep.subr.mxu0 0.0
          %563 = vmatpush1.msra.mxu0 0.0
          %564 = vmatprep.subr.mxu0 0.0
          %565 = vmatpush1.msra.mxu0 0.0
          %566 = vmatprep.subr.mxu0 0.0
          %567 = vmatpush1.msra.mxu0 0.0
          %568 = vmatprep.subr.mxu0 0.0
          %569 = vmatpush1.msra.mxu0 0.0
          %570 = vmatprep.subr.mxu0 0.0
          %571 = vmatpush1.msra.mxu0 0.0
          %572 = vmatprep.subr.mxu0 0.0
          %573 = vmatpush1.msra.mxu0 0.0
          %574 = vmatprep.subr.mxu0 0.0
          %575 = vmatpush1.msra.mxu0 0.0
          %576 = vmatprep.subr.mxu0 0.0
          %577 = vmatpush1.msra.mxu0 0.0
          %578 = vmatprep.subr.mxu0 0.0
          %579 = vmatpush1.msra.mxu0 0.0
          %580 = vmatprep.subr.mxu0 0.0
          %581 = vmatpush1.msra.mxu0 0.0
          %582 = vmatprep.subr.mxu0 0.0
          %583 = vmatpush1.msra.mxu0 0.0
          %584 = vmatprep.subr.mxu0 0.0
          %585 = vmatpush1.msra.mxu0 0.0
          %586 = vmatprep.subr.mxu0 0.0
          %587 = vmatpush1.msra.mxu0 0.0
          %588 = vmatprep.subr.mxu0 0.0
          %589 = vmatpush1.msra.mxu0 0.0
          %590 = vmatprep.subr.mxu0 0.0
          %591 = vmatpush1.msra.mxu0 0.0
          %592 = vmatprep.subr.mxu0 0.0
          %593 = vmatpush1.msra.mxu0 0.0
          %594 = vmatprep.subr.mxu0 0.0
          %595 = vmatpush1.msra.mxu0 0.0
          %596 = vmatprep.subr.mxu0 0.0
          %597 = vmatpush1.msra.mxu0 0.0
          %598 = vmatprep.subr.mxu0 0.0
          %599 = vmatpush1.msra.mxu0 0.0
          %600 = vmatprep.subr.mxu0 0.0
          %601 = vmatpush1.msra.mxu0 0.0
          %602 = vmatprep.subr.mxu0 0.0
          %603 = vmatpush1.msra.mxu0 0.0
          %604 = vmatprep.subr.mxu0 0.0
          %605 = vmatpush1.msra.mxu0 0.0
          %606 = vmatprep.subr.mxu0 0.0
          %607 = vmatpush1.msra.mxu0 0.0
          %608 = vmatprep.subr.mxu0 0.0
          %609 = vmatpush1.msra.mxu0 0.0
          %610 = vmatprep.subr.mxu0 0.0
          %611 = vmatpush1.msra.mxu0 0.0
          %612 = vmatprep.subr.mxu0 0.0
          %613 = vmatpush1.msra.mxu0 0.0
          %614 = vmatprep.mubr.f32.mxu0 0.0
          %615 = vmatmul.mubr.f32.gmra.mrb[0].mxu0 %v548
          %v616 = vpop.f32.mrb[0].mxu0
          %v617 = vadd.f32 0.0, %v616
          %v618 = vpop.f32.mrb[0].mxu0
          %619 = vdwg.mxu0
          %v620 = vadd.f32 %v538, %v617
          %v621 = vld [vmem:[#allocation2 + $0x4] sm:$0x1]
          %v622 = vld [vmem:[#allocation2 + $0x1c] sm:$0x1]
          %s623 = scalar_lea.vmem [#allocation6], 64
          %v624 = vld [vmem:[%s623] sm:$0xff]
          %v625 = vld [vmem:[%s623 + $0x8] sm:$0xff]
          %v628 = vrot.slane %v622, 7
          %v629 = vsel %vm307, %v628, %v621
          %v630 = vsel %vm284, %v629, 0
          %632 = vmatprep.subr.mxu0 0.0
          %633 = vmatpush1.msra.mxu0 %v624
          %634 = vmatprep.subr.mxu0 0.0
          %635 = vmatpush1.msra.mxu0 %v625
          %636 = vmatprep.subr.mxu0 0.0
          %637 = vmatpush1.msra.mxu0 0.0
          %638 = vmatprep.subr.mxu0 0.0
          %639 = vmatpush1.msra.mxu0 0.0
          %640 = vmatprep.subr.mxu0 0.0
          %641 = vmatpush1.msra.mxu0 0.0
          %642 = vmatprep.subr.mxu0 0.0
          %643 = vmatpush1.msra.mxu0 0.0
          %644 = vmatprep.subr.mxu0 0.0
          %645 = vmatpush1.msra.mxu0 0.0
          %646 = vmatprep.subr.mxu0 0.0
          %647 = vmatpush1.msra.mxu0 0.0
          %648 = vmatprep.subr.mxu0 0.0
          %649 = vmatpush1.msra.mxu0 0.0
          %650 = vmatprep.subr.mxu0 0.0
          %651 = vmatpush1.msra.mxu0 0.0
          %652 = vmatprep.subr.mxu0 0.0
          %653 = vmatpush1.msra.mxu0 0.0
          %654 = vmatprep.subr.mxu0 0.0
          %655 = vmatpush1.msra.mxu0 0.0
          %656 = vmatprep.subr.mxu0 0.0
          %657 = vmatpush1.msra.mxu0 0.0
          %658 = vmatprep.subr.mxu0 0.0
          %659 = vmatpush1.msra.mxu0 0.0
          %660 = vmatprep.subr.mxu0 0.0
          %661 = vmatpush1.msra.mxu0 0.0
          %662 = vmatprep.subr.mxu0 0.0
          %663 = vmatpush1.msra.mxu0 0.0
          %664 = vmatprep.subr.mxu0 0.0
          %665 = vmatpush1.msra.mxu0 0.0
          %666 = vmatprep.subr.mxu0 0.0
          %667 = vmatpush1.msra.mxu0 0.0
          %668 = vmatprep.subr.mxu0 0.0
          %669 = vmatpush1.msra.mxu0 0.0
          %670 = vmatprep.subr.mxu0 0.0
          %671 = vmatpush1.msra.mxu0 0.0
          %672 = vmatprep.subr.mxu0 0.0
          %673 = vmatpush1.msra.mxu0 0.0
          %674 = vmatprep.subr.mxu0 0.0
          %675 = vmatpush1.msra.mxu0 0.0
          %676 = vmatprep.subr.mxu0 0.0
          %677 = vmatpush1.msra.mxu0 0.0
          %678 = vmatprep.subr.mxu0 0.0
          %679 = vmatpush1.msra.mxu0 0.0
          %680 = vmatprep.subr.mxu0 0.0
          %681 = vmatpush1.msra.mxu0 0.0
          %682 = vmatprep.subr.mxu0 0.0
          %683 = vmatpush1.msra.mxu0 0.0
          %684 = vmatprep.subr.mxu0 0.0
          %685 = vmatpush1.msra.mxu0 0.0
          %686 = vmatprep.subr.mxu0 0.0
          %687 = vmatpush1.msra.mxu0 0.0
          %688 = vmatprep.subr.mxu0 0.0
          %689 = vmatpush1.msra.mxu0 0.0
          %690 = vmatprep.subr.mxu0 0.0
          %691 = vmatpush1.msra.mxu0 0.0
          %692 = vmatprep.subr.mxu0 0.0
          %693 = vmatpush1.msra.mxu0 0.0
          %694 = vmatprep.subr.mxu0 0.0
          %695 = vmatpush1.msra.mxu0 0.0
          %696 = vmatprep.mubr.f32.mxu0 0.0
          %697 = vmatmul.mubr.f32.gmra.mrb[0].mxu0 %v630
          %v698 = vpop.f32.mrb[0].mxu0
          %v699 = vadd.f32 0.0, %v698
          %v700 = vpop.f32.mrb[0].mxu0
          %701 = vdwg.mxu0
          %v702 = vadd.f32 %v620, %v699
          %v703 = vld [vmem:[#allocation2 + $0x5] sm:$0x1]
          %v704 = vld [vmem:[#allocation2 + $0x1d] sm:$0x1]
          %s705 = scalar_lea.vmem [#allocation6], 80
          %v706 = vld [vmem:[%s705] sm:$0xff]
          %v707 = vld [vmem:[%s705 + $0x8] sm:$0xff]
          %v710 = vrot.slane %v704, 7
          %v711 = vsel %vm307, %v710, %v703
          %v712 = vsel %vm284, %v711, 0
          %714 = vmatprep.subr.mxu0 0.0
          %715 = vmatpush1.msra.mxu0 %v706
          %716 = vmatprep.subr.mxu0 0.0
          %717 = vmatpush1.msra.mxu0 %v707
          %718 = vmatprep.subr.mxu0 0.0
          %719 = vmatpush1.msra.mxu0 0.0
          %720 = vmatprep.subr.mxu0 0.0
          %721 = vmatpush1.msra.mxu0 0.0
          %722 = vmatprep.subr.mxu0 0.0
          %723 = vmatpush1.msra.mxu0 0.0
          %724 = vmatprep.subr.mxu0 0.0
          %725 = vmatpush1.msra.mxu0 0.0
          %726 = vmatprep.subr.mxu0 0.0
          %727 = vmatpush1.msra.mxu0 0.0
          %728 = vmatprep.subr.mxu0 0.0
          %729 = vmatpush1.msra.mxu0 0.0
          %730 = vmatprep.subr.mxu0 0.0
          %731 = vmatpush1.msra.mxu0 0.0
          %732 = vmatprep.subr.mxu0 0.0
          %733 = vmatpush1.msra.mxu0 0.0
          %734 = vmatprep.subr.mxu0 0.0
          %735 = vmatpush1.msra.mxu0 0.0
          %736 = vmatprep.subr.mxu0 0.0
          %737 = vmatpush1.msra.mxu0 0.0
          %738 = vmatprep.subr.mxu0 0.0
          %739 = vmatpush1.msra.mxu0 0.0
          %740 = vmatprep.subr.mxu0 0.0
          %741 = vmatpush1.msra.mxu0 0.0
          %742 = vmatprep.subr.mxu0 0.0
          %743 = vmatpush1.msra.mxu0 0.0
          %744 = vmatprep.subr.mxu0 0.0
          %745 = vmatpush1.msra.mxu0 0.0
          %746 = vmatprep.subr.mxu0 0.0
          %747 = vmatpush1.msra.mxu0 0.0
          %748 = vmatprep.subr.mxu0 0.0
          %749 = vmatpush1.msra.mxu0 0.0
          %750 = vmatprep.subr.mxu0 0.0
          %751 = vmatpush1.msra.mxu0 0.0
          %752 = vmatprep.subr.mxu0 0.0
          %753 = vmatpush1.msra.mxu0 0.0
          %754 = vmatprep.subr.mxu0 0.0
          %755 = vmatpush1.msra.mxu0 0.0
          %756 = vmatprep.subr.mxu0 0.0
          %757 = vmatpush1.msra.mxu0 0.0
          %758 = vmatprep.subr.mxu0 0.0
          %759 = vmatpush1.msra.mxu0 0.0
          %760 = vmatprep.subr.mxu0 0.0
          %761 = vmatpush1.msra.mxu0 0.0
          %762 = vmatprep.subr.mxu0 0.0
          %763 = vmatpush1.msra.mxu0 0.0
          %764 = vmatprep.subr.mxu0 0.0
          %765 = vmatpush1.msra.mxu0 0.0
          %766 = vmatprep.subr.mxu0 0.0
          %767 = vmatpush1.msra.mxu0 0.0
          %768 = vmatprep.subr.mxu0 0.0
          %769 = vmatpush1.msra.mxu0 0.0
          %770 = vmatprep.subr.mxu0 0.0
          %771 = vmatpush1.msra.mxu0 0.0
          %772 = vmatprep.subr.mxu0 0.0
          %773 = vmatpush1.msra.mxu0 0.0
          %774 = vmatprep.subr.mxu0 0.0
          %775 = vmatpush1.msra.mxu0 0.0
          %776 = vmatprep.subr.mxu0 0.0
          %777 = vmatpush1.msra.mxu0 0.0
          %778 = vmatprep.mubr.f32.mxu0 0.0
          %779 = vmatmul.mubr.f32.gmra.mrb[0].mxu0 %v712
          %v780 = vpop.f32.mrb[0].mxu0
          %v781 = vadd.f32 0.0, %v780
          %v782 = vpop.f32.mrb[0].mxu0
          %783 = vdwg.mxu0
          %v784 = vadd.f32 %v702, %v781
          %v785 = vld [vmem:[#allocation2 + $0x6] sm:$0x1]
          %v786 = vld [vmem:[#allocation2 + $0x1e] sm:$0x1]
          %s787 = scalar_lea.vmem [#allocation6], 96
          %v788 = vld [vmem:[%s787] sm:$0xff]
          %v789 = vld [vmem:[%s787 + $0x8] sm:$0xff]
          %v792 = vrot.slane %v786, 7
          %v793 = vsel %vm307, %v792, %v785
          %v794 = vsel %vm284, %v793, 0
          %796 = vmatprep.subr.mxu0 0.0
          %797 = vmatpush1.msra.mxu0 %v788
          %798 = vmatprep.subr.mxu0 0.0
          %799 = vmatpush1.msra.mxu0 %v789
          %800 = vmatprep.subr.mxu0 0.0
          %801 = vmatpush1.msra.mxu0 0.0
          %802 = vmatprep.subr.mxu0 0.0
          %803 = vmatpush1.msra.mxu0 0.0
          %804 = vmatprep.subr.mxu0 0.0
          %805 = vmatpush1.msra.mxu0 0.0
          %806 = vmatprep.subr.mxu0 0.0
          %807 = vmatpush1.msra.mxu0 0.0
          %808 = vmatprep.subr.mxu0 0.0
          %809 = vmatpush1.msra.mxu0 0.0
          %810 = vmatprep.subr.mxu0 0.0
          %811 = vmatpush1.msra.mxu0 0.0
          %812 = vmatprep.subr.mxu0 0.0
          %813 = vmatpush1.msra.mxu0 0.0
          %814 = vmatprep.subr.mxu0 0.0
          %815 = vmatpush1.msra.mxu0 0.0
          %816 = vmatprep.subr.mxu0 0.0
          %817 = vmatpush1.msra.mxu0 0.0
          %818 = vmatprep.subr.mxu0 0.0
          %819 = vmatpush1.msra.mxu0 0.0
          %820 = vmatprep.subr.mxu0 0.0
          %821 = vmatpush1.msra.mxu0 0.0
          %822 = vmatprep.subr.mxu0 0.0
          %823 = vmatpush1.msra.mxu0 0.0
          %824 = vmatprep.subr.mxu0 0.0
          %825 = vmatpush1.msra.mxu0 0.0
          %826 = vmatprep.subr.mxu0 0.0
          %827 = vmatpush1.msra.mxu0 0.0
          %828 = vmatprep.subr.mxu0 0.0
          %829 = vmatpush1.msra.mxu0 0.0
          %830 = vmatprep.subr.mxu0 0.0
          %831 = vmatpush1.msra.mxu0 0.0
          %832 = vmatprep.subr.mxu0 0.0
          %833 = vmatpush1.msra.mxu0 0.0
          %834 = vmatprep.subr.mxu0 0.0
          %835 = vmatpush1.msra.mxu0 0.0
          %836 = vmatprep.subr.mxu0 0.0
          %837 = vmatpush1.msra.mxu0 0.0
          %838 = vmatprep.subr.mxu0 0.0
          %839 = vmatpush1.msra.mxu0 0.0
          %840 = vmatprep.subr.mxu0 0.0
          %841 = vmatpush1.msra.mxu0 0.0
          %842 = vmatprep.subr.mxu0 0.0
          %843 = vmatpush1.msra.mxu0 0.0
          %844 = vmatprep.subr.mxu0 0.0
          %845 = vmatpush1.msra.mxu0 0.0
          %846 = vmatprep.subr.mxu0 0.0
          %847 = vmatpush1.msra.mxu0 0.0
          %848 = vmatprep.subr.mxu0 0.0
          %849 = vmatpush1.msra.mxu0 0.0
          %850 = vmatprep.subr.mxu0 0.0
          %851 = vmatpush1.msra.mxu0 0.0
          %852 = vmatprep.subr.mxu0 0.0
          %853 = vmatpush1.msra.mxu0 0.0
          %854 = vmatprep.subr.mxu0 0.0
          %855 = vmatpush1.msra.mxu0 0.0
          %856 = vmatprep.subr.mxu0 0.0
          %857 = vmatpush1.msra.mxu0 0.0
          %858 = vmatprep.subr.mxu0 0.0
          %859 = vmatpush1.msra.mxu0 0.0
          %860 = vmatprep.mubr.f32.mxu0 0.0
          %861 = vmatmul.mubr.f32.gmra.mrb[0].mxu0 %v794
          %v862 = vpop.f32.mrb[0].mxu0
          %v863 = vadd.f32 0.0, %v862
          %v864 = vpop.f32.mrb[0].mxu0
          %865 = vdwg.mxu0
          %v866 = vadd.f32 %v784, %v863
          %v867 = vld [vmem:[#allocation2 + $0x7] sm:$0x1]
          %v868 = vld [vmem:[#allocation2 + $0x1f] sm:$0x1]
          %s869 = scalar_lea.vmem [#allocation6], 112
          %v870 = vld [vmem:[%s869] sm:$0xff]
          %v871 = vld [vmem:[%s869 + $0x8] sm:$0xff]
          %v874 = vrot.slane %v868, 7
          %v875 = vsel %vm307, %v874, %v867
          %v876 = vsel %vm284, %v875, 0
          %878 = vmatprep.subr.mxu0 0.0
          %879 = vmatpush1.msra.mxu0 %v870
          %880 = vmatprep.subr.mxu0 0.0
          %881 = vmatpush1.msra.mxu0 %v871
          %882 = vmatprep.subr.mxu0 0.0
          %883 = vmatpush1.msra.mxu0 0.0
          %884 = vmatprep.subr.mxu0 0.0
          %885 = vmatpush1.msra.mxu0 0.0
          %886 = vmatprep.subr.mxu0 0.0
          %887 = vmatpush1.msra.mxu0 0.0
          %888 = vmatprep.subr.mxu0 0.0
          %889 = vmatpush1.msra.mxu0 0.0
          %890 = vmatprep.subr.mxu0 0.0
          %891 = vmatpush1.msra.mxu0 0.0
          %892 = vmatprep.subr.mxu0 0.0
          %893 = vmatpush1.msra.mxu0 0.0
          %894 = vmatprep.subr.mxu0 0.0
          %895 = vmatpush1.msra.mxu0 0.0
          %896 = vmatprep.subr.mxu0 0.0
          %897 = vmatpush1.msra.mxu0 0.0
          %898 = vmatprep.subr.mxu0 0.0
          %899 = vmatpush1.msra.mxu0 0.0
          %900 = vmatprep.subr.mxu0 0.0
          %901 = vmatpush1.msra.mxu0 0.0
          %902 = vmatprep.subr.mxu0 0.0
          %903 = vmatpush1.msra.mxu0 0.0
          %904 = vmatprep.subr.mxu0 0.0
          %905 = vmatpush1.msra.mxu0 0.0
          %906 = vmatprep.subr.mxu0 0.0
          %907 = vmatpush1.msra.mxu0 0.0
          %908 = vmatprep.subr.mxu0 0.0
          %909 = vmatpush1.msra.mxu0 0.0
          %910 = vmatprep.subr.mxu0 0.0
          %911 = vmatpush1.msra.mxu0 0.0
          %912 = vmatprep.subr.mxu0 0.0
          %913 = vmatpush1.msra.mxu0 0.0
          %914 = vmatprep.subr.mxu0 0.0
          %915 = vmatpush1.msra.mxu0 0.0
          %916 = vmatprep.subr.mxu0 0.0
          %917 = vmatpush1.msra.mxu0 0.0
          %918 = vmatprep.subr.mxu0 0.0
          %919 = vmatpush1.msra.mxu0 0.0
          %920 = vmatprep.subr.mxu0 0.0
          %921 = vmatpush1.msra.mxu0 0.0
          %922 = vmatprep.subr.mxu0 0.0
          %923 = vmatpush1.msra.mxu0 0.0
          %924 = vmatprep.subr.mxu0 0.0
          %925 = vmatpush1.msra.mxu0 0.0
          %926 = vmatprep.subr.mxu0 0.0
          %927 = vmatpush1.msra.mxu0 0.0
          %928 = vmatprep.subr.mxu0 0.0
          %929 = vmatpush1.msra.mxu0 0.0
          %930 = vmatprep.subr.mxu0 0.0
          %931 = vmatpush1.msra.mxu0 0.0
          %932 = vmatprep.subr.mxu0 0.0
          %933 = vmatpush1.msra.mxu0 0.0
          %934 = vmatprep.subr.mxu0 0.0
          %935 = vmatpush1.msra.mxu0 0.0
          %936 = vmatprep.subr.mxu0 0.0
          %937 = vmatpush1.msra.mxu0 0.0
          %938 = vmatprep.subr.mxu0 0.0
          %939 = vmatpush1.msra.mxu0 0.0
          %940 = vmatprep.subr.mxu0 0.0
          %941 = vmatpush1.msra.mxu0 0.0
          %942 = vmatprep.mubr.f32.mxu0 0.0
          %943 = vmatmul.mubr.f32.gmra.mrb[0].mxu0 %v876
          %v944 = vpop.f32.mrb[0].mxu0
          %v945 = vadd.f32 0.0, %v944
          %v946 = vpop.f32.mrb[0].mxu0
          %947 = vdwg.mxu0
          %v948 = vadd.f32 %v866, %v945
          %s949 = scalar_lea.vmem [#allocation2], 8
          %v950 = vld [vmem:[%s949] sm:$0x1]
          %v951 = vld [vmem:[%s949 + $0x18] sm:$0x1]
          %s952 = scalar_lea.vmem [#allocation6], 128
          %v953 = vld [vmem:[%s952] sm:$0xff]
          %v954 = vld [vmem:[%s952 + $0x8] sm:$0xff]
          %v957 = vrot.slane %v951, 7
          %v958 = vsel %vm307, %v957, %v950
          %v959 = vsel %vm284, %v958, 0
          %961 = vmatprep.subr.mxu0 0.0
          %962 = vmatpush1.msra.mxu0 %v953
          %963 = vmatprep.subr.mxu0 0.0
          %964 = vmatpush1.msra.mxu0 %v954
          %965 = vmatprep.subr.mxu0 0.0
          %966 = vmatpush1.msra.mxu0 0.0
          %967 = vmatprep.subr.mxu0 0.0
          %968 = vmatpush1.msra.mxu0 0.0
          %969 = vmatprep.subr.mxu0 0.0
          %970 = vmatpush1.msra.mxu0 0.0
          %971 = vmatprep.subr.mxu0 0.0
          %972 = vmatpush1.msra.mxu0 0.0
          %973 = vmatprep.subr.mxu0 0.0
          %974 = vmatpush1.msra.mxu0 0.0
          %975 = vmatprep.subr.mxu0 0.0
          %976 = vmatpush1.msra.mxu0 0.0
          %977 = vmatprep.subr.mxu0 0.0
          %978 = vmatpush1.msra.mxu0 0.0
          %979 = vmatprep.subr.mxu0 0.0
          %980 = vmatpush1.msra.mxu0 0.0
          %981 = vmatprep.subr.mxu0 0.0
          %982 = vmatpush1.msra.mxu0 0.0
          %983 = vmatprep.subr.mxu0 0.0
          %984 = vmatpush1.msra.mxu0 0.0
          %985 = vmatprep.subr.mxu0 0.0
          %986 = vmatpush1.msra.mxu0 0.0
          %987 = vmatprep.subr.mxu0 0.0
          %988 = vmatpush1.msra.mxu0 0.0
          %989 = vmatprep.subr.mxu0 0.0
          %990 = vmatpush1.msra.mxu0 0.0
          %991 = vmatprep.subr.mxu0 0.0
          %992 = vmatpush1.msra.mxu0 0.0
          %993 = vmatprep.subr.mxu0 0.0
          %994 = vmatpush1.msra.mxu0 0.0
          %995 = vmatprep.subr.mxu0 0.0
          %996 = vmatpush1.msra.mxu0 0.0
          %997 = vmatprep.subr.mxu0 0.0
          %998 = vmatpush1.msra.mxu0 0.0
          %999 = vmatprep.subr.mxu0 0.0
          %1000 = vmatpush1.msra.mxu0 0.0
          %1001 = vmatprep.subr.mxu0 0.0
          %1002 = vmatpush1.msra.mxu0 0.0
          %1003 = vmatprep.subr.mxu0 0.0
          %1004 = vmatpush1.msra.mxu0 0.0
          %1005 = vmatprep.subr.mxu0 0.0
          %1006 = vmatpush1.msra.mxu0 0.0
          %1007 = vmatprep.subr.mxu0 0.0
          %1008 = vmatpush1.msra.mxu0 0.0
          %1009 = vmatprep.subr.mxu0 0.0
          %1010 = vmatpush1.msra.mxu0 0.0
          %1011 = vmatprep.subr.mxu0 0.0
          %1012 = vmatpush1.msra.mxu0 0.0
          %1013 = vmatprep.subr.mxu0 0.0
          %1014 = vmatpush1.msra.mxu0 0.0
          %1015 = vmatprep.subr.mxu0 0.0
          %1016 = vmatpush1.msra.mxu0 0.0
          %1017 = vmatprep.subr.mxu0 0.0
          %1018 = vmatpush1.msra.mxu0 0.0
          %1019 = vmatprep.subr.mxu0 0.0
          %1020 = vmatpush1.msra.mxu0 0.0
          %1021 = vmatprep.subr.mxu0 0.0
          %1022 = vmatpush1.msra.mxu0 0.0
          %1023 = vmatprep.subr.mxu0 0.0
          %1024 = vmatpush1.msra.mxu0 0.0
          %1025 = vmatprep.mubr.f32.mxu0 0.0
          %1026 = vmatmul.mubr.f32.gmra.mrb[0].mxu0 %v959
          %v1027 = vpop.f32.mrb[0].mxu0
          %v1028 = vadd.f32 0.0, %v1027
          %v1029 = vpop.f32.mrb[0].mxu0
          %1030 = vdwg.mxu0
          %v1031 = vadd.f32 %v948, %v1028
          %v1032 = vld [vmem:[%s949 + $0x1] sm:$0x1]
          %v1033 = vld [vmem:[%s949 + $0x19] sm:$0x1]
          %s1034 = scalar_lea.vmem [#allocation6], 144
          %v1035 = vld [vmem:[%s1034] sm:$0xff]
          %v1036 = vld [vmem:[%s1034 + $0x8] sm:$0xff]
          %v1039 = vrot.slane %v1033, 7
          %v1040 = vsel %vm307, %v1039, %v1032
          %v1041 = vsel %vm284, %v1040, 0
          %1043 = vmatprep.subr.mxu0 0.0
          %1044 = vmatpush1.msra.mxu0 %v1035
          %1045 = vmatprep.subr.mxu0 0.0
          %1046 = vmatpush1.msra.mxu0 %v1036
          %1047 = vmatprep.subr.mxu0 0.0
          %1048 = vmatpush1.msra.mxu0 0.0
          %1049 = vmatprep.subr.mxu0 0.0
          %1050 = vmatpush1.msra.mxu0 0.0
          %1051 = vmatprep.subr.mxu0 0.0
          %1052 = vmatpush1.msra.mxu0 0.0
          %1053 = vmatprep.subr.mxu0 0.0
          %1054 = vmatpush1.msra.mxu0 0.0
          %1055 = vmatprep.subr.mxu0 0.0
          %1056 = vmatpush1.msra.mxu0 0.0
          %1057 = vmatprep.subr.mxu0 0.0
          %1058 = vmatpush1.msra.mxu0 0.0
          %1059 = vmatprep.subr.mxu0 0.0
          %1060 = vmatpush1.msra.mxu0 0.0
          %1061 = vmatprep.subr.mxu0 0.0
          %1062 = vmatpush1.msra.mxu0 0.0
          %1063 = vmatprep.subr.mxu0 0.0
          %1064 = vmatpush1.msra.mxu0 0.0
          %1065 = vmatprep.subr.mxu0 0.0
          %1066 = vmatpush1.msra.mxu0 0.0
          %1067 = vmatprep.subr.mxu0 0.0
          %1068 = vmatpush1.msra.mxu0 0.0
          %1069 = vmatprep.subr.mxu0 0.0
          %1070 = vmatpush1.msra.mxu0 0.0
          %1071 = vmatprep.subr.mxu0 0.0
          %1072 = vmatpush1.msra.mxu0 0.0
          %1073 = vmatprep.subr.mxu0 0.0
          %1074 = vmatpush1.msra.mxu0 0.0
          %1075 = vmatprep.subr.mxu0 0.0
          %1076 = vmatpush1.msra.mxu0 0.0
          %1077 = vmatprep.subr.mxu0 0.0
          %1078 = vmatpush1.msra.mxu0 0.0
          %1079 = vmatprep.subr.mxu0 0.0
          %1080 = vmatpush1.msra.mxu0 0.0
          %1081 = vmatprep.subr.mxu0 0.0
          %1082 = vmatpush1.msra.mxu0 0.0
          %1083 = vmatprep.subr.mxu0 0.0
          %1084 = vmatpush1.msra.mxu0 0.0
          %1085 = vmatprep.subr.mxu0 0.0
          %1086 = vmatpush1.msra.mxu0 0.0
          %1087 = vmatprep.subr.mxu0 0.0
          %1088 = vmatpush1.msra.mxu0 0.0
          %1089 = vmatprep.subr.mxu0 0.0
          %1090 = vmatpush1.msra.mxu0 0.0
          %1091 = vmatprep.subr.mxu0 0.0
          %1092 = vmatpush1.msra.mxu0 0.0
          %1093 = vmatprep.subr.mxu0 0.0
          %1094 = vmatpush1.msra.mxu0 0.0
          %1095 = vmatprep.subr.mxu0 0.0
          %1096 = vmatpush1.msra.mxu0 0.0
          %1097 = vmatprep.subr.mxu0 0.0
          %1098 = vmatpush1.msra.mxu0 0.0
          %1099 = vmatprep.subr.mxu0 0.0
          %1100 = vmatpush1.msra.mxu0 0.0
          %1101 = vmatprep.subr.mxu0 0.0
          %1102 = vmatpush1.msra.mxu0 0.0
          %1103 = vmatprep.subr.mxu0 0.0
          %1104 = vmatpush1.msra.mxu0 0.0
          %1105 = vmatprep.subr.mxu0 0.0
          %1106 = vmatpush1.msra.mxu0 0.0
          %1107 = vmatprep.mubr.f32.mxu0 0.0
          %1108 = vmatmul.mubr.f32.gmra.mrb[0].mxu0 %v1041
          %v1109 = vpop.f32.mrb[0].mxu0
          %v1110 = vadd.f32 0.0, %v1109
          %v1111 = vpop.f32.mrb[0].mxu0
          %1112 = vdwg.mxu0
          %v1113 = vadd.f32 %v1031, %v1110
          %v1114 = vld [vmem:[%s949 + $0x2] sm:$0x1]
          %v1115 = vld [vmem:[%s949 + $0x1a] sm:$0x1]
          %s1116 = scalar_lea.vmem [#allocation6], 160
          %v1117 = vld [vmem:[%s1116] sm:$0xff]
          %v1118 = vld [vmem:[%s1116 + $0x8] sm:$0xff]
          %v1121 = vrot.slane %v1115, 7
          %v1122 = vsel %vm307, %v1121, %v1114
          %v1123 = vsel %vm284, %v1122, 0
          %1125 = vmatprep.subr.mxu0 0.0
          %1126 = vmatpush1.msra.mxu0 %v1117
          %1127 = vmatprep.subr.mxu0 0.0
          %1128 = vmatpush1.msra.mxu0 %v1118
          %1129 = vmatprep.subr.mxu0 0.0
          %1130 = vmatpush1.msra.mxu0 0.0
          %1131 = vmatprep.subr.mxu0 0.0
          %1132 = vmatpush1.msra.mxu0 0.0
          %1133 = vmatprep.subr.mxu0 0.0
          %1134 = vmatpush1.msra.mxu0 0.0
          %1135 = vmatprep.subr.mxu0 0.0
          %1136 = vmatpush1.msra.mxu0 0.0
          %1137 = vmatprep.subr.mxu0 0.0
          %1138 = vmatpush1.msra.mxu0 0.0
          %1139 = vmatprep.subr.mxu0 0.0
          %1140 = vmatpush1.msra.mxu0 0.0
          %1141 = vmatprep.subr.mxu0 0.0
          %1142 = vmatpush1.msra.mxu0 0.0
          %1143 = vmatprep.subr.mxu0 0.0
          %1144 = vmatpush1.msra.mxu0 0.0
          %1145 = vmatprep.subr.mxu0 0.0
          %1146 = vmatpush1.msra.mxu0 0.0
          %1147 = vmatprep.subr.mxu0 0.0
          %1148 = vmatpush1.msra.mxu0 0.0
          %1149 = vmatprep.subr.mxu0 0.0
          %1150 = vmatpush1.msra.mxu0 0.0
          %1151 = vmatprep.subr.mxu0 0.0
          %1152 = vmatpush1.msra.mxu0 0.0
          %1153 = vmatprep.subr.mxu0 0.0
          %1154 = vmatpush1.msra.mxu0 0.0
          %1155 = vmatprep.subr.mxu0 0.0
          %1156 = vmatpush1.msra.mxu0 0.0
          %1157 = vmatprep.subr.mxu0 0.0
          %1158 = vmatpush1.msra.mxu0 0.0
          %1159 = vmatprep.subr.mxu0 0.0
          %1160 = vmatpush1.msra.mxu0 0.0
          %1161 = vmatprep.subr.mxu0 0.0
          %1162 = vmatpush1.msra.mxu0 0.0
          %1163 = vmatprep.subr.mxu0 0.0
          %1164 = vmatpush1.msra.mxu0 0.0
          %1165 = vmatprep.subr.mxu0 0.0
          %1166 = vmatpush1.msra.mxu0 0.0
          %1167 = vmatprep.subr.mxu0 0.0
          %1168 = vmatpush1.msra.mxu0 0.0
          %1169 = vmatprep.subr.mxu0 0.0
          %1170 = vmatpush1.msra.mxu0 0.0
          %1171 = vmatprep.subr.mxu0 0.0
          %1172 = vmatpush1.msra.mxu0 0.0
          %1173 = vmatprep.subr.mxu0 0.0
          %1174 = vmatpush1.msra.mxu0 0.0
          %1175 = vmatprep.subr.mxu0 0.0
          %1176 = vmatpush1.msra.mxu0 0.0
          %1177 = vmatprep.subr.mxu0 0.0
          %1178 = vmatpush1.msra.mxu0 0.0
          %1179 = vmatprep.subr.mxu0 0.0
          %1180 = vmatpush1.msra.mxu0 0.0
          %1181 = vmatprep.subr.mxu0 0.0
          %1182 = vmatpush1.msra.mxu0 0.0
          %1183 = vmatprep.subr.mxu0 0.0
          %1184 = vmatpush1.msra.mxu0 0.0
          %1185 = vmatprep.subr.mxu0 0.0
          %1186 = vmatpush1.msra.mxu0 0.0
          %1187 = vmatprep.subr.mxu0 0.0
          %1188 = vmatpush1.msra.mxu0 0.0
          %1189 = vmatprep.mubr.f32.mxu0 0.0
          %1190 = vmatmul.mubr.f32.gmra.mrb[0].mxu0 %v1123
          %v1191 = vpop.f32.mrb[0].mxu0
          %v1192 = vadd.f32 0.0, %v1191
          %v1193 = vpop.f32.mrb[0].mxu0
          %1194 = vdwg.mxu0
          %v1195 = vadd.f32 %v1113, %v1192
          %v1196 = vld [vmem:[%s949 + $0x3] sm:$0x1]
          %v1197 = vld [vmem:[%s949 + $0x1b] sm:$0x1]
          %s1198 = scalar_lea.vmem [#allocation6], 176
          %v1199 = vld [vmem:[%s1198] sm:$0xff]
          %v1200 = vld [vmem:[%s1198 + $0x8] sm:$0xff]
          %v1203 = vrot.slane %v1197, 7
          %v1204 = vsel %vm307, %v1203, %v1196
          %v1205 = vsel %vm284, %v1204, 0
          %1207 = vmatprep.subr.mxu0 0.0
          %1208 = vmatpush1.msra.mxu0 %v1199
          %1209 = vmatprep.subr.mxu0 0.0
          %1210 = vmatpush1.msra.mxu0 %v1200
          %1211 = vmatprep.subr.mxu0 0.0
          %1212 = vmatpush1.msra.mxu0 0.0
          %1213 = vmatprep.subr.mxu0 0.0
          %1214 = vmatpush1.msra.mxu0 0.0
          %1215 = vmatprep.subr.mxu0 0.0
          %1216 = vmatpush1.msra.mxu0 0.0
          %1217 = vmatprep.subr.mxu0 0.0
          %1218 = vmatpush1.msra.mxu0 0.0
          %1219 = vmatprep.subr.mxu0 0.0
          %1220 = vmatpush1.msra.mxu0 0.0
          %1221 = vmatprep.subr.mxu0 0.0
          %1222 = vmatpush1.msra.mxu0 0.0
          %1223 = vmatprep.subr.mxu0 0.0
          %1224 = vmatpush1.msra.mxu0 0.0
          %1225 = vmatprep.subr.mxu0 0.0
          %1226 = vmatpush1.msra.mxu0 0.0
          %1227 = vmatprep.subr.mxu0 0.0
          %1228 = vmatpush1.msra.mxu0 0.0
          %1229 = vmatprep.subr.mxu0 0.0
          %1230 = vmatpush1.msra.mxu0 0.0
          %1231 = vmatprep.subr.mxu0 0.0
          %1232 = vmatpush1.msra.mxu0 0.0
          %1233 = vmatprep.subr.mxu0 0.0
          %1234 = vmatpush1.msra.mxu0 0.0
          %1235 = vmatprep.subr.mxu0 0.0
          %1236 = vmatpush1.msra.mxu0 0.0
          %1237 = vmatprep.subr.mxu0 0.0
          %1238 = vmatpush1.msra.mxu0 0.0
          %1239 = vmatprep.subr.mxu0 0.0
          %1240 = vmatpush1.msra.mxu0 0.0
          %1241 = vmatprep.subr.mxu0 0.0
          %1242 = vmatpush1.msra.mxu0 0.0
          %1243 = vmatprep.subr.mxu0 0.0
          %1244 = vmatpush1.msra.mxu0 0.0
          %1245 = vmatprep.subr.mxu0 0.0
          %1246 = vmatpush1.msra.mxu0 0.0
          %1247 = vmatprep.subr.mxu0 0.0
          %1248 = vmatpush1.msra.mxu0 0.0
          %1249 = vmatprep.subr.mxu0 0.0
          %1250 = vmatpush1.msra.mxu0 0.0
          %1251 = vmatprep.subr.mxu0 0.0
          %1252 = vmatpush1.msra.mxu0 0.0
          %1253 = vmatprep.subr.mxu0 0.0
          %1254 = vmatpush1.msra.mxu0 0.0
          %1255 = vmatprep.subr.mxu0 0.0
          %1256 = vmatpush1.msra.mxu0 0.0
          %1257 = vmatprep.subr.mxu0 0.0
          %1258 = vmatpush1.msra.mxu0 0.0
          %1259 = vmatprep.subr.mxu0 0.0
          %1260 = vmatpush1.msra.mxu0 0.0
          %1261 = vmatprep.subr.mxu0 0.0
          %1262 = vmatpush1.msra.mxu0 0.0
          %1263 = vmatprep.subr.mxu0 0.0
          %1264 = vmatpush1.msra.mxu0 0.0
          %1265 = vmatprep.subr.mxu0 0.0
          %1266 = vmatpush1.msra.mxu0 0.0
          %1267 = vmatprep.subr.mxu0 0.0
          %1268 = vmatpush1.msra.mxu0 0.0
          %1269 = vmatprep.subr.mxu0 0.0
          %1270 = vmatpush1.msra.mxu0 0.0
          %1271 = vmatprep.mubr.f32.mxu0 0.0
          %1272 = vmatmul.mubr.f32.gmra.mrb[0].mxu0 %v1205
          %v1273 = vpop.f32.mrb[0].mxu0
          %v1274 = vadd.f32 0.0, %v1273
          %v1275 = vpop.f32.mrb[0].mxu0
          %1276 = vdwg.mxu0
          %v1277 = vadd.f32 %v1195, %v1274
          %v1278 = vld [vmem:[%s949 + $0x4] sm:$0x1]
          %v1279 = vld [vmem:[%s949 + $0x1c] sm:$0x1]
          %s1280 = scalar_lea.vmem [#allocation6], 192
          %v1281 = vld [vmem:[%s1280] sm:$0xff]
          %v1282 = vld [vmem:[%s1280 + $0x8] sm:$0xff]
          %v1285 = vrot.slane %v1279, 7
          %v1286 = vsel %vm307, %v1285, %v1278
          %v1287 = vsel %vm284, %v1286, 0
          %1289 = vmatprep.subr.mxu0 0.0
          %1290 = vmatpush1.msra.mxu0 %v1281
          %1291 = vmatprep.subr.mxu0 0.0
          %1292 = vmatpush1.msra.mxu0 %v1282
          %1293 = vmatprep.subr.mxu0 0.0
          %1294 = vmatpush1.msra.mxu0 0.0
          %1295 = vmatprep.subr.mxu0 0.0
          %1296 = vmatpush1.msra.mxu0 0.0
          %1297 = vmatprep.subr.mxu0 0.0
          %1298 = vmatpush1.msra.mxu0 0.0
          %1299 = vmatprep.subr.mxu0 0.0
          %1300 = vmatpush1.msra.mxu0 0.0
          %1301 = vmatprep.subr.mxu0 0.0
          %1302 = vmatpush1.msra.mxu0 0.0
          %1303 = vmatprep.subr.mxu0 0.0
          %1304 = vmatpush1.msra.mxu0 0.0
          %1305 = vmatprep.subr.mxu0 0.0
          %1306 = vmatpush1.msra.mxu0 0.0
          %1307 = vmatprep.subr.mxu0 0.0
          %1308 = vmatpush1.msra.mxu0 0.0
          %1309 = vmatprep.subr.mxu0 0.0
          %1310 = vmatpush1.msra.mxu0 0.0
          %1311 = vmatprep.subr.mxu0 0.0
          %1312 = vmatpush1.msra.mxu0 0.0
          %1313 = vmatprep.subr.mxu0 0.0
          %1314 = vmatpush1.msra.mxu0 0.0
          %1315 = vmatprep.subr.mxu0 0.0
          %1316 = vmatpush1.msra.mxu0 0.0
          %1317 = vmatprep.subr.mxu0 0.0
          %1318 = vmatpush1.msra.mxu0 0.0
          %1319 = vmatprep.subr.mxu0 0.0
          %1320 = vmatpush1.msra.mxu0 0.0
          %1321 = vmatprep.subr.mxu0 0.0
          %1322 = vmatpush1.msra.mxu0 0.0
          %1323 = vmatprep.subr.mxu0 0.0
          %1324 = vmatpush1.msra.mxu0 0.0
          %1325 = vmatprep.subr.mxu0 0.0
          %1326 = vmatpush1.msra.mxu0 0.0
          %1327 = vmatprep.subr.mxu0 0.0
          %1328 = vmatpush1.msra.mxu0 0.0
          %1329 = vmatprep.subr.mxu0 0.0
          %1330 = vmatpush1.msra.mxu0 0.0
          %1331 = vmatprep.subr.mxu0 0.0
          %1332 = vmatpush1.msra.mxu0 0.0
          %1333 = vmatprep.subr.mxu0 0.0
          %1334 = vmatpush1.msra.mxu0 0.0
          %1335 = vmatprep.subr.mxu0 0.0
          %1336 = vmatpush1.msra.mxu0 0.0
          %1337 = vmatprep.subr.mxu0 0.0
          %1338 = vmatpush1.msra.mxu0 0.0
          %1339 = vmatprep.subr.mxu0 0.0
          %1340 = vmatpush1.msra.mxu0 0.0
          %1341 = vmatprep.subr.mxu0 0.0
          %1342 = vmatpush1.msra.mxu0 0.0
          %1343 = vmatprep.subr.mxu0 0.0
          %1344 = vmatpush1.msra.mxu0 0.0
          %1345 = vmatprep.subr.mxu0 0.0
          %1346 = vmatpush1.msra.mxu0 0.0
          %1347 = vmatprep.subr.mxu0 0.0
          %1348 = vmatpush1.msra.mxu0 0.0
          %1349 = vmatprep.subr.mxu0 0.0
          %1350 = vmatpush1.msra.mxu0 0.0
          %1351 = vmatprep.subr.mxu0 0.0
          %1352 = vmatpush1.msra.mxu0 0.0
          %1353 = vmatprep.mubr.f32.mxu0 0.0
          %1354 = vmatmul.mubr.f32.gmra.mrb[0].mxu0 %v1287
          %v1355 = vpop.f32.mrb[0].mxu0
          %v1356 = vadd.f32 0.0, %v1355
          %v1357 = vpop.f32.mrb[0].mxu0
          %1358 = vdwg.mxu0
          %v1359 = vadd.f32 %v1277, %v1356
          %v1360 = vld [vmem:[%s949 + $0x5] sm:$0x1]
          %v1361 = vld [vmem:[%s949 + $0x1d] sm:$0x1]
          %s1362 = scalar_lea.vmem [#allocation6], 208
          %v1363 = vld [vmem:[%s1362] sm:$0xff]
          %v1364 = vld [vmem:[%s1362 + $0x8] sm:$0xff]
          %v1367 = vrot.slane %v1361, 7
          %v1368 = vsel %vm307, %v1367, %v1360
          %v1369 = vsel %vm284, %v1368, 0
          %1371 = vmatprep.subr.mxu0 0.0
          %1372 = vmatpush1.msra.mxu0 %v1363
          %1373 = vmatprep.subr.mxu0 0.0
          %1374 = vmatpush1.msra.mxu0 %v1364
          %1375 = vmatprep.subr.mxu0 0.0
          %1376 = vmatpush1.msra.mxu0 0.0
          %1377 = vmatprep.subr.mxu0 0.0
          %1378 = vmatpush1.msra.mxu0 0.0
          %1379 = vmatprep.subr.mxu0 0.0
          %1380 = vmatpush1.msra.mxu0 0.0
          %1381 = vmatprep.subr.mxu0 0.0
          %1382 = vmatpush1.msra.mxu0 0.0
          %1383 = vmatprep.subr.mxu0 0.0
          %1384 = vmatpush1.msra.mxu0 0.0
          %1385 = vmatprep.subr.mxu0 0.0
          %1386 = vmatpush1.msra.mxu0 0.0
          %1387 = vmatprep.subr.mxu0 0.0
          %1388 = vmatpush1.msra.mxu0 0.0
          %1389 = vmatprep.subr.mxu0 0.0
          %1390 = vmatpush1.msra.mxu0 0.0
          %1391 = vmatprep.subr.mxu0 0.0
          %1392 = vmatpush1.msra.mxu0 0.0
          %1393 = vmatprep.subr.mxu0 0.0
          %1394 = vmatpush1.msra.mxu0 0.0
          %1395 = vmatprep.subr.mxu0 0.0
          %1396 = vmatpush1.msra.mxu0 0.0
          %1397 = vmatprep.subr.mxu0 0.0
          %1398 = vmatpush1.msra.mxu0 0.0
          %1399 = vmatprep.subr.mxu0 0.0
          %1400 = vmatpush1.msra.mxu0 0.0
          %1401 = vmatprep.subr.mxu0 0.0
          %1402 = vmatpush1.msra.mxu0 0.0
          %1403 = vmatprep.subr.mxu0 0.0
          %1404 = vmatpush1.msra.mxu0 0.0
          %1405 = vmatprep.subr.mxu0 0.0
          %1406 = vmatpush1.msra.mxu0 0.0
          %1407 = vmatprep.subr.mxu0 0.0
          %1408 = vmatpush1.msra.mxu0 0.0
          %1409 = vmatprep.subr.mxu0 0.0
          %1410 = vmatpush1.msra.mxu0 0.0
          %1411 = vmatprep.subr.mxu0 0.0
          %1412 = vmatpush1.msra.mxu0 0.0
          %1413 = vmatprep.subr.mxu0 0.0
          %1414 = vmatpush1.msra.mxu0 0.0
          %1415 = vmatprep.subr.mxu0 0.0
          %1416 = vmatpush1.msra.mxu0 0.0
          %1417 = vmatprep.subr.mxu0 0.0
          %1418 = vmatpush1.msra.mxu0 0.0
          %1419 = vmatprep.subr.mxu0 0.0
          %1420 = vmatpush1.msra.mxu0 0.0
          %1421 = vmatprep.subr.mxu0 0.0
          %1422 = vmatpush1.msra.mxu0 0.0
          %1423 = vmatprep.subr.mxu0 0.0
          %1424 = vmatpush1.msra.mxu0 0.0
          %1425 = vmatprep.subr.mxu0 0.0
          %1426 = vmatpush1.msra.mxu0 0.0
          %1427 = vmatprep.subr.mxu0 0.0
          %1428 = vmatpush1.msra.mxu0 0.0
          %1429 = vmatprep.subr.mxu0 0.0
          %1430 = vmatpush1.msra.mxu0 0.0
          %1431 = vmatprep.subr.mxu0 0.0
          %1432 = vmatpush1.msra.mxu0 0.0
          %1433 = vmatprep.subr.mxu0 0.0
          %1434 = vmatpush1.msra.mxu0 0.0
          %1435 = vmatprep.mubr.f32.mxu0 0.0
          %1436 = vmatmul.mubr.f32.gmra.mrb[0].mxu0 %v1369
          %v1437 = vpop.f32.mrb[0].mxu0
          %v1438 = vadd.f32 0.0, %v1437
          %v1439 = vpop.f32.mrb[0].mxu0
          %1440 = vdwg.mxu0
          %v1441 = vadd.f32 %v1359, %v1438
          %v1442 = vld [vmem:[%s949 + $0x6] sm:$0x1]
          %v1443 = vld [vmem:[%s949 + $0x1e] sm:$0x1]
          %s1444 = scalar_lea.vmem [#allocation6], 224
          %v1445 = vld [vmem:[%s1444] sm:$0xff]
          %v1446 = vld [vmem:[%s1444 + $0x8] sm:$0xff]
          %v1449 = vrot.slane %v1443, 7
          %v1450 = vsel %vm307, %v1449, %v1442
          %v1451 = vsel %vm284, %v1450, 0
          %1453 = vmatprep.subr.mxu0 0.0
          %1454 = vmatpush1.msra.mxu0 %v1445
          %1455 = vmatprep.subr.mxu0 0.0
          %1456 = vmatpush1.msra.mxu0 %v1446
          %1457 = vmatprep.subr.mxu0 0.0
          %1458 = vmatpush1.msra.mxu0 0.0
          %1459 = vmatprep.subr.mxu0 0.0
          %1460 = vmatpush1.msra.mxu0 0.0
          %1461 = vmatprep.subr.mxu0 0.0
          %1462 = vmatpush1.msra.mxu0 0.0
          %1463 = vmatprep.subr.mxu0 0.0
          %1464 = vmatpush1.msra.mxu0 0.0
          %1465 = vmatprep.subr.mxu0 0.0
          %1466 = vmatpush1.msra.mxu0 0.0
          %1467 = vmatprep.subr.mxu0 0.0
          %1468 = vmatpush1.msra.mxu0 0.0
          %1469 = vmatprep.subr.mxu0 0.0
          %1470 = vmatpush1.msra.mxu0 0.0
          %1471 = vmatprep.subr.mxu0 0.0
          %1472 = vmatpush1.msra.mxu0 0.0
          %1473 = vmatprep.subr.mxu0 0.0
          %1474 = vmatpush1.msra.mxu0 0.0
          %1475 = vmatprep.subr.mxu0 0.0
          %1476 = vmatpush1.msra.mxu0 0.0
          %1477 = vmatprep.subr.mxu0 0.0
          %1478 = vmatpush1.msra.mxu0 0.0
          %1479 = vmatprep.subr.mxu0 0.0
          %1480 = vmatpush1.msra.mxu0 0.0
          %1481 = vmatprep.subr.mxu0 0.0
          %1482 = vmatpush1.msra.mxu0 0.0
          %1483 = vmatprep.subr.mxu0 0.0
          %1484 = vmatpush1.msra.mxu0 0.0
          %1485 = vmatprep.subr.mxu0 0.0
          %1486 = vmatpush1.msra.mxu0 0.0
          %1487 = vmatprep.subr.mxu0 0.0
          %1488 = vmatpush1.msra.mxu0 0.0
          %1489 = vmatprep.subr.mxu0 0.0
          %1490 = vmatpush1.msra.mxu0 0.0
          %1491 = vmatprep.subr.mxu0 0.0
          %1492 = vmatpush1.msra.mxu0 0.0
          %1493 = vmatprep.subr.mxu0 0.0
          %1494 = vmatpush1.msra.mxu0 0.0
          %1495 = vmatprep.subr.mxu0 0.0
          %1496 = vmatpush1.msra.mxu0 0.0
          %1497 = vmatprep.subr.mxu0 0.0
          %1498 = vmatpush1.msra.mxu0 0.0
          %1499 = vmatprep.subr.mxu0 0.0
          %1500 = vmatpush1.msra.mxu0 0.0
          %1501 = vmatprep.subr.mxu0 0.0
          %1502 = vmatpush1.msra.mxu0 0.0
          %1503 = vmatprep.subr.mxu0 0.0
          %1504 = vmatpush1.msra.mxu0 0.0
          %1505 = vmatprep.subr.mxu0 0.0
          %1506 = vmatpush1.msra.mxu0 0.0
          %1507 = vmatprep.subr.mxu0 0.0
          %1508 = vmatpush1.msra.mxu0 0.0
          %1509 = vmatprep.subr.mxu0 0.0
          %1510 = vmatpush1.msra.mxu0 0.0
          %1511 = vmatprep.subr.mxu0 0.0
          %1512 = vmatpush1.msra.mxu0 0.0
          %1513 = vmatprep.subr.mxu0 0.0
          %1514 = vmatpush1.msra.mxu0 0.0
          %1515 = vmatprep.subr.mxu0 0.0
          %1516 = vmatpush1.msra.mxu0 0.0
          %1517 = vmatprep.mubr.f32.mxu0 0.0
          %1518 = vmatmul.mubr.f32.gmra.mrb[0].mxu0 %v1451
          %v1519 = vpop.f32.mrb[0].mxu0
          %v1520 = vadd.f32 0.0, %v1519
          %v1521 = vpop.f32.mrb[0].mxu0
          %1522 = vdwg.mxu0
          %v1523 = vadd.f32 %v1441, %v1520
          %v1524 = vld [vmem:[%s949 + $0x7] sm:$0x1]
          %v1525 = vld [vmem:[%s949 + $0x1f] sm:$0x1]
          %s1526 = scalar_lea.vmem [#allocation6], 240
          %v1527 = vld [vmem:[%s1526] sm:$0xff]
          %v1528 = vld [vmem:[%s1526 + $0x8] sm:$0xff]
          %v1531 = vrot.slane %v1525, 7
          %v1532 = vsel %vm307, %v1531, %v1524
          %v1533 = vsel %vm284, %v1532, 0
          %1535 = vmatprep.subr.mxu0 0.0
          %1536 = vmatpush1.msra.mxu0 %v1527
          %1537 = vmatprep.subr.mxu0 0.0
          %1538 = vmatpush1.msra.mxu0 %v1528
          %1539 = vmatprep.subr.mxu0 0.0
          %1540 = vmatpush1.msra.mxu0 0.0
          %1541 = vmatprep.subr.mxu0 0.0
          %1542 = vmatpush1.msra.mxu0 0.0
          %1543 = vmatprep.subr.mxu0 0.0
          %1544 = vmatpush1.msra.mxu0 0.0
          %1545 = vmatprep.subr.mxu0 0.0
          %1546 = vmatpush1.msra.mxu0 0.0
          %1547 = vmatprep.subr.mxu0 0.0
          %1548 = vmatpush1.msra.mxu0 0.0
          %1549 = vmatprep.subr.mxu0 0.0
          %1550 = vmatpush1.msra.mxu0 0.0
          %1551 = vmatprep.subr.mxu0 0.0
          %1552 = vmatpush1.msra.mxu0 0.0
          %1553 = vmatprep.subr.mxu0 0.0
          %1554 = vmatpush1.msra.mxu0 0.0
          %1555 = vmatprep.subr.mxu0 0.0
          %1556 = vmatpush1.msra.mxu0 0.0
          %1557 = vmatprep.subr.mxu0 0.0
          %1558 = vmatpush1.msra.mxu0 0.0
          %1559 = vmatprep.subr.mxu0 0.0
          %1560 = vmatpush1.msra.mxu0 0.0
          %1561 = vmatprep.subr.mxu0 0.0
          %1562 = vmatpush1.msra.mxu0 0.0
          %1563 = vmatprep.subr.mxu0 0.0
          %1564 = vmatpush1.msra.mxu0 0.0
          %1565 = vmatprep.subr.mxu0 0.0
          %1566 = vmatpush1.msra.mxu0 0.0
          %1567 = vmatprep.subr.mxu0 0.0
          %1568 = vmatpush1.msra.mxu0 0.0
          %1569 = vmatprep.subr.mxu0 0.0
          %1570 = vmatpush1.msra.mxu0 0.0
          %1571 = vmatprep.subr.mxu0 0.0
          %1572 = vmatpush1.msra.mxu0 0.0
          %1573 = vmatprep.subr.mxu0 0.0
          %1574 = vmatpush1.msra.mxu0 0.0
          %1575 = vmatprep.subr.mxu0 0.0
          %1576 = vmatpush1.msra.mxu0 0.0
          %1577 = vmatprep.subr.mxu0 0.0
          %1578 = vmatpush1.msra.mxu0 0.0
          %1579 = vmatprep.subr.mxu0 0.0
          %1580 = vmatpush1.msra.mxu0 0.0
          %1581 = vmatprep.subr.mxu0 0.0
          %1582 = vmatpush1.msra.mxu0 0.0
          %1583 = vmatprep.subr.mxu0 0.0
          %1584 = vmatpush1.msra.mxu0 0.0
          %1585 = vmatprep.subr.mxu0 0.0
          %1586 = vmatpush1.msra.mxu0 0.0
          %1587 = vmatprep.subr.mxu0 0.0
          %1588 = vmatpush1.msra.mxu0 0.0
          %1589 = vmatprep.subr.mxu0 0.0
          %1590 = vmatpush1.msra.mxu0 0.0
          %1591 = vmatprep.subr.mxu0 0.0
          %1592 = vmatpush1.msra.mxu0 0.0
          %1593 = vmatprep.subr.mxu0 0.0
          %1594 = vmatpush1.msra.mxu0 0.0
          %1595 = vmatprep.subr.mxu0 0.0
          %1596 = vmatpush1.msra.mxu0 0.0
          %1597 = vmatprep.subr.mxu0 0.0
          %1598 = vmatpush1.msra.mxu0 0.0
          %1599 = vmatprep.mubr.f32.mxu0 0.0
          %1600 = vmatmul.mubr.f32.gmra.mrb[0].mxu0 %v1533
          %v1601 = vpop.f32.mrb[0].mxu0
          %v1602 = vadd.f32 0.0, %v1601
          %v1603 = vpop.f32.mrb[0].mxu0
          %1604 = vdwg.mxu0
          %v1605 = vadd.f32 %v1523, %v1602
          %s1606 = scalar_lea.vmem [#allocation2], 16
          %v1607 = vld [vmem:[%s1606] sm:$0x1]
          %v1608 = vld [vmem:[%s1606 + $0x18] sm:$0x1]
          %s1609 = scalar_lea.vmem [#allocation6], 256
          %v1610 = vld [vmem:[%s1609] sm:$0xff]
          %v1611 = vld [vmem:[%s1609 + $0x8] sm:$0xff]
          %v1614 = vrot.slane %v1608, 7
          %v1615 = vsel %vm307, %v1614, %v1607
          %v1616 = vsel %vm284, %v1615, 0
          %1618 = vmatprep.subr.mxu0 0.0
          %1619 = vmatpush1.msra.mxu0 %v1610
          %1620 = vmatprep.subr.mxu0 0.0
          %1621 = vmatpush1.msra.mxu0 %v1611
          %1622 = vmatprep.subr.mxu0 0.0
          %1623 = vmatpush1.msra.mxu0 0.0
          %1624 = vmatprep.subr.mxu0 0.0
          %1625 = vmatpush1.msra.mxu0 0.0
          %1626 = vmatprep.subr.mxu0 0.0
          %1627 = vmatpush1.msra.mxu0 0.0
          %1628 = vmatprep.subr.mxu0 0.0
          %1629 = vmatpush1.msra.mxu0 0.0
          %1630 = vmatprep.subr.mxu0 0.0
          %1631 = vmatpush1.msra.mxu0 0.0
          %1632 = vmatprep.subr.mxu0 0.0
          %1633 = vmatpush1.msra.mxu0 0.0
          %1634 = vmatprep.subr.mxu0 0.0
          %1635 = vmatpush1.msra.mxu0 0.0
          %1636 = vmatprep.subr.mxu0 0.0
          %1637 = vmatpush1.msra.mxu0 0.0
          %1638 = vmatprep.subr.mxu0 0.0
          %1639 = vmatpush1.msra.mxu0 0.0
          %1640 = vmatprep.subr.mxu0 0.0
          %1641 = vmatpush1.msra.mxu0 0.0
          %1642 = vmatprep.subr.mxu0 0.0
          %1643 = vmatpush1.msra.mxu0 0.0
          %1644 = vmatprep.subr.mxu0 0.0
          %1645 = vmatpush1.msra.mxu0 0.0
          %1646 = vmatprep.subr.mxu0 0.0
          %1647 = vmatpush1.msra.mxu0 0.0
          %1648 = vmatprep.subr.mxu0 0.0
          %1649 = vmatpush1.msra.mxu0 0.0
          %1650 = vmatprep.subr.mxu0 0.0
          %1651 = vmatpush1.msra.mxu0 0.0
          %1652 = vmatprep.subr.mxu0 0.0
          %1653 = vmatpush1.msra.mxu0 0.0
          %1654 = vmatprep.subr.mxu0 0.0
          %1655 = vmatpush1.msra.mxu0 0.0
          %1656 = vmatprep.subr.mxu0 0.0
          %1657 = vmatpush1.msra.mxu0 0.0
          %1658 = vmatprep.subr.mxu0 0.0
          %1659 = vmatpush1.msra.mxu0 0.0
          %1660 = vmatprep.subr.mxu0 0.0
          %1661 = vmatpush1.msra.mxu0 0.0
          %1662 = vmatprep.subr.mxu0 0.0
          %1663 = vmatpush1.msra.mxu0 0.0
          %1664 = vmatprep.subr.mxu0 0.0
          %1665 = vmatpush1.msra.mxu0 0.0
          %1666 = vmatprep.subr.mxu0 0.0
          %1667 = vmatpush1.msra.mxu0 0.0
          %1668 = vmatprep.subr.mxu0 0.0
          %1669 = vmatpush1.msra.mxu0 0.0
          %1670 = vmatprep.subr.mxu0 0.0
          %1671 = vmatpush1.msra.mxu0 0.0
          %1672 = vmatprep.subr.mxu0 0.0
          %1673 = vmatpush1.msra.mxu0 0.0
          %1674 = vmatprep.subr.mxu0 0.0
          %1675 = vmatpush1.msra.mxu0 0.0
          %1676 = vmatprep.subr.mxu0 0.0
          %1677 = vmatpush1.msra.mxu0 0.0
          %1678 = vmatprep.subr.mxu0 0.0
          %1679 = vmatpush1.msra.mxu0 0.0
          %1680 = vmatprep.subr.mxu0 0.0
          %1681 = vmatpush1.msra.mxu0 0.0
          %1682 = vmatprep.mubr.f32.mxu0 0.0
          %1683 = vmatmul.mubr.f32.gmra.mrb[0].mxu0 %v1616
          %v1684 = vpop.f32.mrb[0].mxu0
          %v1685 = vadd.f32 0.0, %v1684
          %v1686 = vpop.f32.mrb[0].mxu0
          %1687 = vdwg.mxu0
          %v1688 = vadd.f32 %v1605, %v1685
          %v1689 = vld [vmem:[%s1606 + $0x1] sm:$0x1]
          %v1690 = vld [vmem:[%s1606 + $0x19] sm:$0x1]
          %s1691 = scalar_lea.vmem [#allocation6], 272
          %v1692 = vld [vmem:[%s1691] sm:$0xff]
          %v1693 = vld [vmem:[%s1691 + $0x8] sm:$0xff]
          %v1696 = vrot.slane %v1690, 7
          %v1697 = vsel %vm307, %v1696, %v1689
          %v1698 = vsel %vm284, %v1697, 0
          %1700 = vmatprep.subr.mxu0 0.0
          %1701 = vmatpush1.msra.mxu0 %v1692
          %1702 = vmatprep.subr.mxu0 0.0
          %1703 = vmatpush1.msra.mxu0 %v1693
          %1704 = vmatprep.subr.mxu0 0.0
          %1705 = vmatpush1.msra.mxu0 0.0
          %1706 = vmatprep.subr.mxu0 0.0
          %1707 = vmatpush1.msra.mxu0 0.0
          %1708 = vmatprep.subr.mxu0 0.0
          %1709 = vmatpush1.msra.mxu0 0.0
          %1710 = vmatprep.subr.mxu0 0.0
          %1711 = vmatpush1.msra.mxu0 0.0
          %1712 = vmatprep.subr.mxu0 0.0
          %1713 = vmatpush1.msra.mxu0 0.0
          %1714 = vmatprep.subr.mxu0 0.0
          %1715 = vmatpush1.msra.mxu0 0.0
          %1716 = vmatprep.subr.mxu0 0.0
          %1717 = vmatpush1.msra.mxu0 0.0
          %1718 = vmatprep.subr.mxu0 0.0
          %1719 = vmatpush1.msra.mxu0 0.0
          %1720 = vmatprep.subr.mxu0 0.0
          %1721 = vmatpush1.msra.mxu0 0.0
          %1722 = vmatprep.subr.mxu0 0.0
          %1723 = vmatpush1.msra.mxu0 0.0
          %1724 = vmatprep.subr.mxu0 0.0
          %1725 = vmatpush1.msra.mxu0 0.0
          %1726 = vmatprep.subr.mxu0 0.0
          %1727 = vmatpush1.msra.mxu0 0.0
          %1728 = vmatprep.subr.mxu0 0.0
          %1729 = vmatpush1.msra.mxu0 0.0
          %1730 = vmatprep.subr.mxu0 0.0
          %1731 = vmatpush1.msra.mxu0 0.0
          %1732 = vmatprep.subr.mxu0 0.0
          %1733 = vmatpush1.msra.mxu0 0.0
          %1734 = vmatprep.subr.mxu0 0.0
          %1735 = vmatpush1.msra.mxu0 0.0
          %1736 = vmatprep.subr.mxu0 0.0
          %1737 = vmatpush1.msra.mxu0 0.0
          %1738 = vmatprep.subr.mxu0 0.0
          %1739 = vmatpush1.msra.mxu0 0.0
          %1740 = vmatprep.subr.mxu0 0.0
          %1741 = vmatpush1.msra.mxu0 0.0
          %1742 = vmatprep.subr.mxu0 0.0
          %1743 = vmatpush1.msra.mxu0 0.0
          %1744 = vmatprep.subr.mxu0 0.0
          %1745 = vmatpush1.msra.mxu0 0.0
          %1746 = vmatprep.subr.mxu0 0.0
          %1747 = vmatpush1.msra.mxu0 0.0
          %1748 = vmatprep.subr.mxu0 0.0
          %1749 = vmatpush1.msra.mxu0 0.0
          %1750 = vmatprep.subr.mxu0 0.0
          %1751 = vmatpush1.msra.mxu0 0.0
          %1752 = vmatprep.subr.mxu0 0.0
          %1753 = vmatpush1.msra.mxu0 0.0
          %1754 = vmatprep.subr.mxu0 0.0
          %1755 = vmatpush1.msra.mxu0 0.0
          %1756 = vmatprep.subr.mxu0 0.0
          %1757 = vmatpush1.msra.mxu0 0.0
          %1758 = vmatprep.subr.mxu0 0.0
          %1759 = vmatpush1.msra.mxu0 0.0
          %1760 = vmatprep.subr.mxu0 0.0
          %1761 = vmatpush1.msra.mxu0 0.0
          %1762 = vmatprep.subr.mxu0 0.0
          %1763 = vmatpush1.msra.mxu0 0.0
          %1764 = vmatprep.mubr.f32.mxu0 0.0
          %1765 = vmatmul.mubr.f32.gmra.mrb[0].mxu0 %v1698
          %v1766 = vpop.f32.mrb[0].mxu0
          %v1767 = vadd.f32 0.0, %v1766
          %v1768 = vpop.f32.mrb[0].mxu0
          %1769 = vdwg.mxu0
          %v1770 = vadd.f32 %v1688, %v1767
          %v1771 = vld [vmem:[%s1606 + $0x2] sm:$0x1]
          %v1772 = vld [vmem:[%s1606 + $0x1a] sm:$0x1]
          %s1773 = scalar_lea.vmem [#allocation6], 288
          %v1774 = vld [vmem:[%s1773] sm:$0xff]
          %v1775 = vld [vmem:[%s1773 + $0x8] sm:$0xff]
          %v1778 = vrot.slane %v1772, 7
          %v1779 = vsel %vm307, %v1778, %v1771
          %v1780 = vsel %vm284, %v1779, 0
          %1782 = vmatprep.subr.mxu0 0.0
          %1783 = vmatpush1.msra.mxu0 %v1774
          %1784 = vmatprep.subr.mxu0 0.0
          %1785 = vmatpush1.msra.mxu0 %v1775
          %1786 = vmatprep.subr.mxu0 0.0
          %1787 = vmatpush1.msra.mxu0 0.0
          %1788 = vmatprep.subr.mxu0 0.0
          %1789 = vmatpush1.msra.mxu0 0.0
          %1790 = vmatprep.subr.mxu0 0.0
          %1791 = vmatpush1.msra.mxu0 0.0
          %1792 = vmatprep.subr.mxu0 0.0
          %1793 = vmatpush1.msra.mxu0 0.0
          %1794 = vmatprep.subr.mxu0 0.0
          %1795 = vmatpush1.msra.mxu0 0.0
          %1796 = vmatprep.subr.mxu0 0.0
          %1797 = vmatpush1.msra.mxu0 0.0
          %1798 = vmatprep.subr.mxu0 0.0
          %1799 = vmatpush1.msra.mxu0 0.0
          %1800 = vmatprep.subr.mxu0 0.0
          %1801 = vmatpush1.msra.mxu0 0.0
          %1802 = vmatprep.subr.mxu0 0.0
          %1803 = vmatpush1.msra.mxu0 0.0
          %1804 = vmatprep.subr.mxu0 0.0
          %1805 = vmatpush1.msra.mxu0 0.0
          %1806 = vmatprep.subr.mxu0 0.0
          %1807 = vmatpush1.msra.mxu0 0.0
          %1808 = vmatprep.subr.mxu0 0.0
          %1809 = vmatpush1.msra.mxu0 0.0
          %1810 = vmatprep.subr.mxu0 0.0
          %1811 = vmatpush1.msra.mxu0 0.0
          %1812 = vmatprep.subr.mxu0 0.0
          %1813 = vmatpush1.msra.mxu0 0.0
          %1814 = vmatprep.subr.mxu0 0.0
          %1815 = vmatpush1.msra.mxu0 0.0
          %1816 = vmatprep.subr.mxu0 0.0
          %1817 = vmatpush1.msra.mxu0 0.0
          %1818 = vmatprep.subr.mxu0 0.0
          %1819 = vmatpush1.msra.mxu0 0.0
          %1820 = vmatprep.subr.mxu0 0.0
          %1821 = vmatpush1.msra.mxu0 0.0
          %1822 = vmatprep.subr.mxu0 0.0
          %1823 = vmatpush1.msra.mxu0 0.0
          %1824 = vmatprep.subr.mxu0 0.0
          %1825 = vmatpush1.msra.mxu0 0.0
          %1826 = vmatprep.subr.mxu0 0.0
          %1827 = vmatpush1.msra.mxu0 0.0
          %1828 = vmatprep.subr.mxu0 0.0
          %1829 = vmatpush1.msra.mxu0 0.0
          %1830 = vmatprep.subr.mxu0 0.0
          %1831 = vmatpush1.msra.mxu0 0.0
          %1832 = vmatprep.subr.mxu0 0.0
          %1833 = vmatpush1.msra.mxu0 0.0
          %1834 = vmatprep.subr.mxu0 0.0
          %1835 = vmatpush1.msra.mxu0 0.0
          %1836 = vmatprep.subr.mxu0 0.0
          %1837 = vmatpush1.msra.mxu0 0.0
          %1838 = vmatprep.subr.mxu0 0.0
          %1839 = vmatpush1.msra.mxu0 0.0
          %1840 = vmatprep.subr.mxu0 0.0
          %1841 = vmatpush1.msra.mxu0 0.0
          %1842 = vmatprep.subr.mxu0 0.0
          %1843 = vmatpush1.msra.mxu0 0.0
          %1844 = vmatprep.subr.mxu0 0.0
          %1845 = vmatpush1.msra.mxu0 0.0
          %1846 = vmatprep.mubr.f32.mxu0 0.0
          %1847 = vmatmul.mubr.f32.gmra.mrb[0].mxu0 %v1780
          %v1848 = vpop.f32.mrb[0].mxu0
          %v1849 = vadd.f32 0.0, %v1848
          %v1850 = vpop.f32.mrb[0].mxu0
          %1851 = vdwg.mxu0
          %v1852 = vadd.f32 %v1770, %v1849
          %v1853 = vld [vmem:[%s1606 + $0x3] sm:$0x1]
          %v1854 = vld [vmem:[%s1606 + $0x1b] sm:$0x1]
          %s1855 = scalar_lea.vmem [#allocation6], 304
          %v1856 = vld [vmem:[%s1855] sm:$0xff]
          %v1857 = vld [vmem:[%s1855 + $0x8] sm:$0xff]
          %v1860 = vrot.slane %v1854, 7
          %v1861 = vsel %vm307, %v1860, %v1853
          %v1862 = vsel %vm284, %v1861, 0
          %1864 = vmatprep.subr.mxu0 0.0
          %1865 = vmatpush1.msra.mxu0 %v1856
          %1866 = vmatprep.subr.mxu0 0.0
          %1867 = vmatpush1.msra.mxu0 %v1857
          %1868 = vmatprep.subr.mxu0 0.0
          %1869 = vmatpush1.msra.mxu0 0.0
          %1870 = vmatprep.subr.mxu0 0.0
          %1871 = vmatpush1.msra.mxu0 0.0
          %1872 = vmatprep.subr.mxu0 0.0
          %1873 = vmatpush1.msra.mxu0 0.0
          %1874 = vmatprep.subr.mxu0 0.0
          %1875 = vmatpush1.msra.mxu0 0.0
          %1876 = vmatprep.subr.mxu0 0.0
          %1877 = vmatpush1.msra.mxu0 0.0
          %1878 = vmatprep.subr.mxu0 0.0
          %1879 = vmatpush1.msra.mxu0 0.0
          %1880 = vmatprep.subr.mxu0 0.0
          %1881 = vmatpush1.msra.mxu0 0.0
          %1882 = vmatprep.subr.mxu0 0.0
          %1883 = vmatpush1.msra.mxu0 0.0
          %1884 = vmatprep.subr.mxu0 0.0
          %1885 = vmatpush1.msra.mxu0 0.0
          %1886 = vmatprep.subr.mxu0 0.0
          %1887 = vmatpush1.msra.mxu0 0.0
          %1888 = vmatprep.subr.mxu0 0.0
          %1889 = vmatpush1.msra.mxu0 0.0
          %1890 = vmatprep.subr.mxu0 0.0
          %1891 = vmatpush1.msra.mxu0 0.0
          %1892 = vmatprep.subr.mxu0 0.0
          %1893 = vmatpush1.msra.mxu0 0.0
          %1894 = vmatprep.subr.mxu0 0.0
          %1895 = vmatpush1.msra.mxu0 0.0
          %1896 = vmatprep.subr.mxu0 0.0
          %1897 = vmatpush1.msra.mxu0 0.0
          %1898 = vmatprep.subr.mxu0 0.0
          %1899 = vmatpush1.msra.mxu0 0.0
          %1900 = vmatprep.subr.mxu0 0.0
          %1901 = vmatpush1.msra.mxu0 0.0
          %1902 = vmatprep.subr.mxu0 0.0
          %1903 = vmatpush1.msra.mxu0 0.0
          %1904 = vmatprep.subr.mxu0 0.0
          %1905 = vmatpush1.msra.mxu0 0.0
          %1906 = vmatprep.subr.mxu0 0.0
          %1907 = vmatpush1.msra.mxu0 0.0
          %1908 = vmatprep.subr.mxu0 0.0
          %1909 = vmatpush1.msra.mxu0 0.0
          %1910 = vmatprep.subr.mxu0 0.0
          %1911 = vmatpush1.msra.mxu0 0.0
          %1912 = vmatprep.subr.mxu0 0.0
          %1913 = vmatpush1.msra.mxu0 0.0
          %1914 = vmatprep.subr.mxu0 0.0
          %1915 = vmatpush1.msra.mxu0 0.0
          %1916 = vmatprep.subr.mxu0 0.0
          %1917 = vmatpush1.msra.mxu0 0.0
          %1918 = vmatprep.subr.mxu0 0.0
          %1919 = vmatpush1.msra.mxu0 0.0
          %1920 = vmatprep.subr.mxu0 0.0
          %1921 = vmatpush1.msra.mxu0 0.0
          %1922 = vmatprep.subr.mxu0 0.0
          %1923 = vmatpush1.msra.mxu0 0.0
          %1924 = vmatprep.subr.mxu0 0.0
          %1925 = vmatpush1.msra.mxu0 0.0
          %1926 = vmatprep.subr.mxu0 0.0
          %1927 = vmatpush1.msra.mxu0 0.0
          %1928 = vmatprep.mubr.f32.mxu0 0.0
          %1929 = vmatmul.mubr.f32.gmra.mrb[0].mxu0 %v1862
          %v1930 = vpop.f32.mrb[0].mxu0
          %v1931 = vadd.f32 0.0, %v1930
          %v1932 = vpop.f32.mrb[0].mxu0
          %1933 = vdwg.mxu0
          %v1934 = vadd.f32 %v1852, %v1931
          %v1935 = vld [vmem:[%s1606 + $0x4] sm:$0x1]
          %v1936 = vld [vmem:[%s1606 + $0x1c] sm:$0x1]
          %s1937 = scalar_lea.vmem [#allocation6], 320
          %v1938 = vld [vmem:[%s1937] sm:$0xff]
          %v1939 = vld [vmem:[%s1937 + $0x8] sm:$0xff]
          %v1942 = vrot.slane %v1936, 7
          %v1943 = vsel %vm307, %v1942, %v1935
          %v1944 = vsel %vm284, %v1943, 0
          %1946 = vmatprep.subr.mxu0 0.0
          %1947 = vmatpush1.msra.mxu0 %v1938
          %1948 = vmatprep.subr.mxu0 0.0
          %1949 = vmatpush1.msra.mxu0 %v1939
          %1950 = vmatprep.subr.mxu0 0.0
          %1951 = vmatpush1.msra.mxu0 0.0
          %1952 = vmatprep.subr.mxu0 0.0
          %1953 = vmatpush1.msra.mxu0 0.0
          %1954 = vmatprep.subr.mxu0 0.0
          %1955 = vmatpush1.msra.mxu0 0.0
          %1956 = vmatprep.subr.mxu0 0.0
          %1957 = vmatpush1.msra.mxu0 0.0
          %1958 = vmatprep.subr.mxu0 0.0
          %1959 = vmatpush1.msra.mxu0 0.0
          %1960 = vmatprep.subr.mxu0 0.0
          %1961 = vmatpush1.msra.mxu0 0.0
          %1962 = vmatprep.subr.mxu0 0.0
          %1963 = vmatpush1.msra.mxu0 0.0
          %1964 = vmatprep.subr.mxu0 0.0
          %1965 = vmatpush1.msra.mxu0 0.0
          %1966 = vmatprep.subr.mxu0 0.0
          %1967 = vmatpush1.msra.mxu0 0.0
          %1968 = vmatprep.subr.mxu0 0.0
          %1969 = vmatpush1.msra.mxu0 0.0
          %1970 = vmatprep.subr.mxu0 0.0
          %1971 = vmatpush1.msra.mxu0 0.0
          %1972 = vmatprep.subr.mxu0 0.0
          %1973 = vmatpush1.msra.mxu0 0.0
          %1974 = vmatprep.subr.mxu0 0.0
          %1975 = vmatpush1.msra.mxu0 0.0
          %1976 = vmatprep.subr.mxu0 0.0
          %1977 = vmatpush1.msra.mxu0 0.0
          %1978 = vmatprep.subr.mxu0 0.0
          %1979 = vmatpush1.msra.mxu0 0.0
          %1980 = vmatprep.subr.mxu0 0.0
          %1981 = vmatpush1.msra.mxu0 0.0
          %1982 = vmatprep.subr.mxu0 0.0
          %1983 = vmatpush1.msra.mxu0 0.0
          %1984 = vmatprep.subr.mxu0 0.0
          %1985 = vmatpush1.msra.mxu0 0.0
          %1986 = vmatprep.subr.mxu0 0.0
          %1987 = vmatpush1.msra.mxu0 0.0
          %1988 = vmatprep.subr.mxu0 0.0
          %1989 = vmatpush1.msra.mxu0 0.0
          %1990 = vmatprep.subr.mxu0 0.0
          %1991 = vmatpush1.msra.mxu0 0.0
          %1992 = vmatprep.subr.mxu0 0.0
          %1993 = vmatpush1.msra.mxu0 0.0
          %1994 = vmatprep.subr.mxu0 0.0
          %1995 = vmatpush1.msra.mxu0 0.0
          %1996 = vmatprep.subr.mxu0 0.0
          %1997 = vmatpush1.msra.mxu0 0.0
          %1998 = vmatprep.subr.mxu0 0.0
          %1999 = vmatpush1.msra.mxu0 0.0
          %2000 = vmatprep.subr.mxu0 0.0
          %2001 = vmatpush1.msra.mxu0 0.0
          %2002 = vmatprep.subr.mxu0 0.0
          %2003 = vmatpush1.msra.mxu0 0.0
          %2004 = vmatprep.subr.mxu0 0.0
          %2005 = vmatpush1.msra.mxu0 0.0
          %2006 = vmatprep.subr.mxu0 0.0
          %2007 = vmatpush1.msra.mxu0 0.0
          %2008 = vmatprep.subr.mxu0 0.0
          %2009 = vmatpush1.msra.mxu0 0.0
          %2010 = vmatprep.mubr.f32.mxu0 0.0
          %2011 = vmatmul.mubr.f32.gmra.mrb[0].mxu0 %v1944
          %v2012 = vpop.f32.mrb[0].mxu0
          %v2013 = vadd.f32 0.0, %v2012
          %v2014 = vpop.f32.mrb[0].mxu0
          %2015 = vdwg.mxu0
          %v2016 = vadd.f32 %v1934, %v2013
          %v2017 = vld [vmem:[%s1606 + $0x5] sm:$0x1]
          %v2018 = vld [vmem:[%s1606 + $0x1d] sm:$0x1]
          %s2019 = scalar_lea.vmem [#allocation6], 336
          %v2020 = vld [vmem:[%s2019] sm:$0xff]
          %v2021 = vld [vmem:[%s2019 + $0x8] sm:$0xff]
          %v2024 = vrot.slane %v2018, 7
          %v2025 = vsel %vm307, %v2024, %v2017
          %v2026 = vsel %vm284, %v2025, 0
          %2028 = vmatprep.subr.mxu0 0.0
          %2029 = vmatpush1.msra.mxu0 %v2020
          %2030 = vmatprep.subr.mxu0 0.0
          %2031 = vmatpush1.msra.mxu0 %v2021
          %2032 = vmatprep.subr.mxu0 0.0
          %2033 = vmatpush1.msra.mxu0 0.0
          %2034 = vmatprep.subr.mxu0 0.0
          %2035 = vmatpush1.msra.mxu0 0.0
          %2036 = vmatprep.subr.mxu0 0.0
          %2037 = vmatpush1.msra.mxu0 0.0
          %2038 = vmatprep.subr.mxu0 0.0
          %2039 = vmatpush1.msra.mxu0 0.0
          %2040 = vmatprep.subr.mxu0 0.0
          %2041 = vmatpush1.msra.mxu0 0.0
          %2042 = vmatprep.subr.mxu0 0.0
          %2043 = vmatpush1.msra.mxu0 0.0
          %2044 = vmatprep.subr.mxu0 0.0
          %2045 = vmatpush1.msra.mxu0 0.0
          %2046 = vmatprep.subr.mxu0 0.0
          %2047 = vmatpush1.msra.mxu0 0.0
          %2048 = vmatprep.subr.mxu0 0.0
          %2049 = vmatpush1.msra.mxu0 0.0
          %2050 = vmatprep.subr.mxu0 0.0
          %2051 = vmatpush1.msra.mxu0 0.0
          %2052 = vmatprep.subr.mxu0 0.0
          %2053 = vmatpush1.msra.mxu0 0.0
          %2054 = vmatprep.subr.mxu0 0.0
          %2055 = vmatpush1.msra.mxu0 0.0
          %2056 = vmatprep.subr.mxu0 0.0
          %2057 = vmatpush1.msra.mxu0 0.0
          %2058 = vmatprep.subr.mxu0 0.0
          %2059 = vmatpush1.msra.mxu0 0.0
          %2060 = vmatprep.subr.mxu0 0.0
          %2061 = vmatpush1.msra.mxu0 0.0
          %2062 = vmatprep.subr.mxu0 0.0
          %2063 = vmatpush1.msra.mxu0 0.0
          %2064 = vmatprep.subr.mxu0 0.0
          %2065 = vmatpush1.msra.mxu0 0.0
          %2066 = vmatprep.subr.mxu0 0.0
          %2067 = vmatpush1.msra.mxu0 0.0
          %2068 = vmatprep.subr.mxu0 0.0
          %2069 = vmatpush1.msra.mxu0 0.0
          %2070 = vmatprep.subr.mxu0 0.0
          %2071 = vmatpush1.msra.mxu0 0.0
          %2072 = vmatprep.subr.mxu0 0.0
          %2073 = vmatpush1.msra.mxu0 0.0
          %2074 = vmatprep.subr.mxu0 0.0
          %2075 = vmatpush1.msra.mxu0 0.0
          %2076 = vmatprep.subr.mxu0 0.0
          %2077 = vmatpush1.msra.mxu0 0.0
          %2078 = vmatprep.subr.mxu0 0.0
          %2079 = vmatpush1.msra.mxu0 0.0
          %2080 = vmatprep.subr.mxu0 0.0
          %2081 = vmatpush1.msra.mxu0 0.0
          %2082 = vmatprep.subr.mxu0 0.0
          %2083 = vmatpush1.msra.mxu0 0.0
          %2084 = vmatprep.subr.mxu0 0.0
          %2085 = vmatpush1.msra.mxu0 0.0
          %2086 = vmatprep.subr.mxu0 0.0
          %2087 = vmatpush1.msra.mxu0 0.0
          %2088 = vmatprep.subr.mxu0 0.0
          %2089 = vmatpush1.msra.mxu0 0.0
          %2090 = vmatprep.subr.mxu0 0.0
          %2091 = vmatpush1.msra.mxu0 0.0
          %2092 = vmatprep.mubr.f32.mxu0 0.0
          %2093 = vmatmul.mubr.f32.gmra.mrb[0].mxu0 %v2026
          %v2094 = vpop.f32.mrb[0].mxu0
          %v2095 = vadd.f32 0.0, %v2094
          %v2096 = vpop.f32.mrb[0].mxu0
          %2097 = vdwg.mxu0
          %v2098 = vadd.f32 %v2016, %v2095
          %v2099 = vld [vmem:[%s1606 + $0x6] sm:$0x1]
          %v2100 = vld [vmem:[%s1606 + $0x1e] sm:$0x1]
          %s2101 = scalar_lea.vmem [#allocation6], 352
          %v2102 = vld [vmem:[%s2101] sm:$0xff]
          %v2103 = vld [vmem:[%s2101 + $0x8] sm:$0xff]
          %v2106 = vrot.slane %v2100, 7
          %v2107 = vsel %vm307, %v2106, %v2099
          %v2108 = vsel %vm284, %v2107, 0
          %2110 = vmatprep.subr.mxu0 0.0
          %2111 = vmatpush1.msra.mxu0 %v2102
          %2112 = vmatprep.subr.mxu0 0.0
          %2113 = vmatpush1.msra.mxu0 %v2103
          %2114 = vmatprep.subr.mxu0 0.0
          %2115 = vmatpush1.msra.mxu0 0.0
          %2116 = vmatprep.subr.mxu0 0.0
          %2117 = vmatpush1.msra.mxu0 0.0
          %2118 = vmatprep.subr.mxu0 0.0
          %2119 = vmatpush1.msra.mxu0 0.0
          %2120 = vmatprep.subr.mxu0 0.0
          %2121 = vmatpush1.msra.mxu0 0.0
          %2122 = vmatprep.subr.mxu0 0.0
          %2123 = vmatpush1.msra.mxu0 0.0
          %2124 = vmatprep.subr.mxu0 0.0
          %2125 = vmatpush1.msra.mxu0 0.0
          %2126 = vmatprep.subr.mxu0 0.0
          %2127 = vmatpush1.msra.mxu0 0.0
          %2128 = vmatprep.subr.mxu0 0.0
          %2129 = vmatpush1.msra.mxu0 0.0
          %2130 = vmatprep.subr.mxu0 0.0
          %2131 = vmatpush1.msra.mxu0 0.0
          %2132 = vmatprep.subr.mxu0 0.0
          %2133 = vmatpush1.msra.mxu0 0.0
          %2134 = vmatprep.subr.mxu0 0.0
          %2135 = vmatpush1.msra.mxu0 0.0
          %2136 = vmatprep.subr.mxu0 0.0
          %2137 = vmatpush1.msra.mxu0 0.0
          %2138 = vmatprep.subr.mxu0 0.0
          %2139 = vmatpush1.msra.mxu0 0.0
          %2140 = vmatprep.subr.mxu0 0.0
          %2141 = vmatpush1.msra.mxu0 0.0
          %2142 = vmatprep.subr.mxu0 0.0
          %2143 = vmatpush1.msra.mxu0 0.0
          %2144 = vmatprep.subr.mxu0 0.0
          %2145 = vmatpush1.msra.mxu0 0.0
          %2146 = vmatprep.subr.mxu0 0.0
          %2147 = vmatpush1.msra.mxu0 0.0
          %2148 = vmatprep.subr.mxu0 0.0
          %2149 = vmatpush1.msra.mxu0 0.0
          %2150 = vmatprep.subr.mxu0 0.0
          %2151 = vmatpush1.msra.mxu0 0.0
          %2152 = vmatprep.subr.mxu0 0.0
          %2153 = vmatpush1.msra.mxu0 0.0
          %2154 = vmatprep.subr.mxu0 0.0
          %2155 = vmatpush1.msra.mxu0 0.0
          %2156 = vmatprep.subr.mxu0 0.0
          %2157 = vmatpush1.msra.mxu0 0.0
          %2158 = vmatprep.subr.mxu0 0.0
          %2159 = vmatpush1.msra.mxu0 0.0
          %2160 = vmatprep.subr.mxu0 0.0
          %2161 = vmatpush1.msra.mxu0 0.0
          %2162 = vmatprep.subr.mxu0 0.0
          %2163 = vmatpush1.msra.mxu0 0.0
          %2164 = vmatprep.subr.mxu0 0.0
          %2165 = vmatpush1.msra.mxu0 0.0
          %2166 = vmatprep.subr.mxu0 0.0
          %2167 = vmatpush1.msra.mxu0 0.0
          %2168 = vmatprep.subr.mxu0 0.0
          %2169 = vmatpush1.msra.mxu0 0.0
          %2170 = vmatprep.subr.mxu0 0.0
          %2171 = vmatpush1.msra.mxu0 0.0
          %2172 = vmatprep.subr.mxu0 0.0
          %2173 = vmatpush1.msra.mxu0 0.0
          %2174 = vmatprep.mubr.f32.mxu0 0.0
          %2175 = vmatmul.mubr.f32.gmra.mrb[0].mxu0 %v2108
          %v2176 = vpop.f32.mrb[0].mxu0
          %v2177 = vadd.f32 0.0, %v2176
          %v2178 = vpop.f32.mrb[0].mxu0
          %2179 = vdwg.mxu0
          %v2180 = vadd.f32 %v2098, %v2177
          %v2181 = vld [vmem:[%s1606 + $0x7] sm:$0x1]
          %v2182 = vld [vmem:[%s1606 + $0x1f] sm:$0x1]
          %s2183 = scalar_lea.vmem [#allocation6], 368
          %v2184 = vld [vmem:[%s2183] sm:$0xff]
          %v2185 = vld [vmem:[%s2183 + $0x8] sm:$0xff]
          %v2188 = vrot.slane %v2182, 7
          %v2189 = vsel %vm307, %v2188, %v2181
          %v2190 = vsel %vm284, %v2189, 0
          %2192 = vmatprep.subr.mxu0 0.0
          %2193 = vmatpush1.msra.mxu0 %v2184
          %2194 = vmatprep.subr.mxu0 0.0
          %2195 = vmatpush1.msra.mxu0 %v2185
          %2196 = vmatprep.subr.mxu0 0.0
          %2197 = vmatpush1.msra.mxu0 0.0
          %2198 = vmatprep.subr.mxu0 0.0
          %2199 = vmatpush1.msra.mxu0 0.0
          %2200 = vmatprep.subr.mxu0 0.0
          %2201 = vmatpush1.msra.mxu0 0.0
          %2202 = vmatprep.subr.mxu0 0.0
          %2203 = vmatpush1.msra.mxu0 0.0
          %2204 = vmatprep.subr.mxu0 0.0
          %2205 = vmatpush1.msra.mxu0 0.0
          %2206 = vmatprep.subr.mxu0 0.0
          %2207 = vmatpush1.msra.mxu0 0.0
          %2208 = vmatprep.subr.mxu0 0.0
          %2209 = vmatpush1.msra.mxu0 0.0
          %2210 = vmatprep.subr.mxu0 0.0
          %2211 = vmatpush1.msra.mxu0 0.0
          %2212 = vmatprep.subr.mxu0 0.0
          %2213 = vmatpush1.msra.mxu0 0.0
          %2214 = vmatprep.subr.mxu0 0.0
          %2215 = vmatpush1.msra.mxu0 0.0
          %2216 = vmatprep.subr.mxu0 0.0
          %2217 = vmatpush1.msra.mxu0 0.0
          %2218 = vmatprep.subr.mxu0 0.0
          %2219 = vmatpush1.msra.mxu0 0.0
          %2220 = vmatprep.subr.mxu0 0.0
          %2221 = vmatpush1.msra.mxu0 0.0
          %2222 = vmatprep.subr.mxu0 0.0
          %2223 = vmatpush1.msra.mxu0 0.0
          %2224 = vmatprep.subr.mxu0 0.0
          %2225 = vmatpush1.msra.mxu0 0.0
          %2226 = vmatprep.subr.mxu0 0.0
          %2227 = vmatpush1.msra.mxu0 0.0
          %2228 = vmatprep.subr.mxu0 0.0
          %2229 = vmatpush1.msra.mxu0 0.0
          %2230 = vmatprep.subr.mxu0 0.0
          %2231 = vmatpush1.msra.mxu0 0.0
          %2232 = vmatprep.subr.mxu0 0.0
          %2233 = vmatpush1.msra.mxu0 0.0
          %2234 = vmatprep.subr.mxu0 0.0
          %2235 = vmatpush1.msra.mxu0 0.0
          %2236 = vmatprep.subr.mxu0 0.0
          %2237 = vmatpush1.msra.mxu0 0.0
          %2238 = vmatprep.subr.mxu0 0.0
          %2239 = vmatpush1.msra.mxu0 0.0
          %2240 = vmatprep.subr.mxu0 0.0
          %2241 = vmatpush1.msra.mxu0 0.0
          %2242 = vmatprep.subr.mxu0 0.0
          %2243 = vmatpush1.msra.mxu0 0.0
          %2244 = vmatprep.subr.mxu0 0.0
          %2245 = vmatpush1.msra.mxu0 0.0
          %2246 = vmatprep.subr.mxu0 0.0
          %2247 = vmatpush1.msra.mxu0 0.0
          %2248 = vmatprep.subr.mxu0 0.0
          %2249 = vmatpush1.msra.mxu0 0.0
          %2250 = vmatprep.subr.mxu0 0.0
          %2251 = vmatpush1.msra.mxu0 0.0
          %2252 = vmatprep.subr.mxu0 0.0
          %2253 = vmatpush1.msra.mxu0 0.0
          %2254 = vmatprep.subr.mxu0 0.0
          %2255 = vmatpush1.msra.mxu0 0.0
          %2256 = vmatprep.mubr.f32.mxu0 0.0
          %2257 = vmatmul.mubr.f32.gmra.mrb[0].mxu0 %v2190
          %v2258 = vpop.f32.mrb[0].mxu0
          %v2259 = vadd.f32 0.0, %v2258
          %v2260 = vpop.f32.mrb[0].mxu0
          %2261 = vdwg.mxu0
          %v2262 = vadd.f32 %v2180, %v2259
          %v2263 = vld [vmem:[#allocation8] sm:$0xff]
          %v2264 = vld [vmem:[#allocation8 + $0x8] sm:$0xff]
          %v2265 = vld [vmem:[#allocation8 + $0x10] sm:$0xff]
          %v2266 = vld [vmem:[#allocation8 + $0x18] sm:$0xff]
          %v2267 = vld [vmem:[#allocation8 + $0x20] sm:$0xff]
          %v2268 = vld [vmem:[#allocation8 + $0x28] sm:$0xff]
          %v2269 = vld [vmem:[#allocation8 + $0x30] sm:$0xff]
          %v2270 = vld [vmem:[#allocation8 + $0x38] sm:$0xff]
          %v2271 = vld [vmem:[#allocation8 + $0x40] sm:$0xff]
          %v2272 = vld [vmem:[#allocation8 + $0x48] sm:$0xff]
          %v2273 = vld [vmem:[#allocation8 + $0x50] sm:$0xff]
          %v2274 = vld [vmem:[#allocation8 + $0x58] sm:$0xff]
          %v2275 = vld [vmem:[#allocation8 + $0x60] sm:$0xff]
          %v2276 = vld [vmem:[#allocation8 + $0x68] sm:$0xff]
          %v2277 = vld [vmem:[#allocation8 + $0x70] sm:$0xff]
          %v2278 = vld [vmem:[#allocation8 + $0x78] sm:$0xff]
          %v2279 = vld [vmem:[%s3] sm:$0x1]
          %v2281 = vlaneseq
          %v2282 = vshrl.u32 %v2281, 7
          %v2283 = vsub.s32 0, %v2282
          %v2284 = vrot.slane %v2279, %v2283
          %2286 = vmatprep.subr.mxu0 0.0
          %2287 = vmatpush1.msra.mxu0 %v2263
          %2288 = vmatprep.subr.mxu0 0.0
          %2289 = vmatpush1.msra.mxu0 %v2264
          %2290 = vmatprep.subr.mxu0 0.0
          %2291 = vmatpush1.msra.mxu0 %v2265
          %2292 = vmatprep.subr.mxu0 0.0
          %2293 = vmatpush1.msra.mxu0 %v2266
          %2294 = vmatprep.subr.mxu0 0.0
          %2295 = vmatpush1.msra.mxu0 %v2267
          %2296 = vmatprep.subr.mxu0 0.0
          %2297 = vmatpush1.msra.mxu0 %v2268
          %2298 = vmatprep.subr.mxu0 0.0
          %2299 = vmatpush1.msra.mxu0 %v2269
          %2300 = vmatprep.subr.mxu0 0.0
          %2301 = vmatpush1.msra.mxu0 %v2270
          %2302 = vmatprep.subr.mxu0 0.0
          %2303 = vmatpush1.msra.mxu0 %v2271
          %2304 = vmatprep.subr.mxu0 0.0
          %2305 = vmatpush1.msra.mxu0 %v2272
          %2306 = vmatprep.subr.mxu0 0.0
          %2307 = vmatpush1.msra.mxu0 %v2273
          %2308 = vmatprep.subr.mxu0 0.0
          %2309 = vmatpush1.msra.mxu0 %v2274
          %2310 = vmatprep.subr.mxu0 0.0
          %2311 = vmatpush1.msra.mxu0 %v2275
          %2312 = vmatprep.subr.mxu0 0.0
          %2313 = vmatpush1.msra.mxu0 %v2276
          %2314 = vmatprep.subr.mxu0 0.0
          %2315 = vmatpush1.msra.mxu0 %v2277
          %2316 = vmatprep.subr.mxu0 0.0
          %2317 = vmatpush1.msra.mxu0 %v2278
          %2318 = vmatprep.subr.mxu0 0.0
          %2319 = vmatpush1.msra.mxu0 0.0
          %2320 = vmatprep.subr.mxu0 0.0
          %2321 = vmatpush1.msra.mxu0 0.0
          %2322 = vmatprep.subr.mxu0 0.0
          %2323 = vmatpush1.msra.mxu0 0.0
          %2324 = vmatprep.subr.mxu0 0.0
          %2325 = vmatpush1.msra.mxu0 0.0
          %2326 = vmatprep.subr.mxu0 0.0
          %2327 = vmatpush1.msra.mxu0 0.0
          %2328 = vmatprep.subr.mxu0 0.0
          %2329 = vmatpush1.msra.mxu0 0.0
          %2330 = vmatprep.subr.mxu0 0.0
          %2331 = vmatpush1.msra.mxu0 0.0
          %2332 = vmatprep.subr.mxu0 0.0
          %2333 = vmatpush1.msra.mxu0 0.0
          %2334 = vmatprep.subr.mxu0 0.0
          %2335 = vmatpush1.msra.mxu0 0.0
          %2336 = vmatprep.subr.mxu0 0.0
          %2337 = vmatpush1.msra.mxu0 0.0
          %2338 = vmatprep.subr.mxu0 0.0
          %2339 = vmatpush1.msra.mxu0 0.0
          %2340 = vmatprep.subr.mxu0 0.0
          %2341 = vmatpush1.msra.mxu0 0.0
          %2342 = vmatprep.subr.mxu0 0.0
          %2343 = vmatpush1.msra.mxu0 0.0
          %2344 = vmatprep.subr.mxu0 0.0
          %2345 = vmatpush1.msra.mxu0 0.0
          %2346 = vmatprep.subr.mxu0 0.0
          %2347 = vmatpush1.msra.mxu0 0.0
          %2348 = vmatprep.subr.mxu0 0.0
          %2349 = vmatpush1.msra.mxu0 0.0
          %2350 = vmatprep.mubr.f32.mxu0 0.0
          %2351 = vmatmul.mubr.f32.gmra.mrb[0].mxu0 %v2262
          %v2352 = vpop.f32.mrb[0].mxu0
          %v2353 = vadd.f32 %v2284, %v2352
          %v2354 = vpop.f32.mrb[0].mxu0
          %2355 = vdwg.mxu0
          %2356 = vst [vmem:[#allocation9] sm:$0x3] %v2353
        $region56: #{tpu_custom_call.1} parent=35 // pred_fallthru
          _
        // Predicated region
        $region57: #{tpu_custom_call.1} parent=35 // pred_check
          %p2357 = pneg %p141
        $region58: #{tpu_custom_call.1} parent=35 // pred_check_branch
          %2359 = sbr.rel (%p2357) target = $region60
        $region59: #{tpu_custom_call.1} parent=35 // pred_region
          %s2361 = ssub.s32 32, 32
          %2362 = vsyncadd [#allocation5], %s2361
          %s2363 = smul.addr %s24, 32
          %s2364 = scalar_lea.hbm %s4, %s2363
          %s2366 = sshll.u32 [#allocation9], 4
          %s2367 = int_to_ptr.vmem [resolvable:$true] %s2366
          %2369 = dma.vmem_to_hbm [thread:$0]  %s2367, 32, %s2364, [#allocation5]
        $region60: #{tpu_custom_call.1} parent=35 // pred_fallthru
          _
        // Predicated region
        $region61: #{tpu_custom_call.1} parent=35 // pred_check
          %p2370 = pneg %p141
        $region62: #{tpu_custom_call.1} parent=35 // pred_check_branch
          %2372 = sbr.rel (%p2370) target = $region64
        $region63: #{tpu_custom_call.1} parent=35 // pred_region
          %2373 = dma.done [#allocation5], 32
        $region64: #{tpu_custom_call.1} parent=35 // pred_fallthru
          _
      $region36: #{tpu_custom_call.1} parent=5 // pred_fallthru
        _
      %p2374 = scmp.le.s32.totalorder 2, %s15
      // Predicated region
      $region65: #{tpu_custom_call.1} parent=5 // pred_check
        %p2375 = pneg %p2374
      $region66: #{tpu_custom_call.1} parent=5 // pred_check_branch
        %2377 = sbr.rel (%p2375) target = $region68
      $region67: #{tpu_custom_call.1} parent=5 // pred_region
        %s2378 = ssub.s32 %s15, 2
      $region68: #{tpu_custom_call.1} parent=5 // pred_fallthru
        _
    $region6: #{tpu_custom_call.1} parent=1 // loop_footer
      %s19 = sadd.s32 1, %s15
    $region7: #{tpu_custom_call.1} parent=1 // loop_footer_branch
      %14 = sbr.rel target = $region3
    $region8: #{tpu_custom_call.1} parent=1 // loop_exit
      _
    %2379 = vsyncpa [#allocation4], 1
    %s2380 = scalar_lea.sflag [#allocation4], 1
    %2381 = vsyncpa %s2380, 1
    %2382 = vsyncpa [#allocation7], 1
    %2383 = vsyncpa [#allocation5], 1
    %s2384 = scalar_lea.sflag [#allocation5], 1
    %2385 = vsyncpa %s2384, 1

</llo_original>
